<compile_context>
chip_gen: v6e
topology: v6e:2x2x1
jax: 0.10.0
libtpu: 0.0.40
codegen_flags: <defaults>
</compile_context>

<pallas_src>
import functools
import math

import jax
import jax.numpy as jnp
from jax import lax
from jax.experimental import pallas as pl
from jax.experimental.pallas import tpu as pltpu

LN_EPS = 1e-3


def text_span_decoder_kernel(
    freq_thres,            # static python int (bound via functools.partial)
    # --- batch-sliced blocks (leading dim 1) ---
    last_hidden_ref,       # [1, 1, H]  f32
    u_enc_ref,             # [1, T, H]  bf16
    embed_z_ref,           # [1, 1, E]  f32
    pv_z_dec_ref,          # [1, Tz, H] bf16
    pv_pz_ref,             # [1, Tz, V] f32   (already shift()-ed + batch-major)
    u_tok_ref,             # [1, T, 1]  int32 token ids (replaces dense one-hot sparse_u_input)
    # --- fused / plain weights (constant blocks) ---
    w_hprev_ref,           # [H, 4H]  f32  = [wa_hid | whh]
    b_hprev_ref,           # [1, 4H]  f32  = [ba | bhh]
    w_enc_ref,             # [H, 2H]  bf16 = [wa_enc | wc1_enc]
    va_ref,                # [H, 1]   bf16
    wih_ref, bih_ref,      # [H+E, 3H], [1, 3H]  f32
    gamma_ref, beta_ref,   # [1, H], [1, H]      f32
    w_gout_ref, b_gout_ref,  # [H, V+2H], [1, V+2H] f32 = [w1 | wc1_gru | wc2_gru]
    w_zdec_ref,            # [H, H]   bf16 = wc2_enc
    v1w_ref, v2w_ref,      # [H, 1]   bf16
    copy_b_ref,            # [1, 2]   f32  (v1b, v2b)
    wmu_ref, bmu_ref,      # [V, E], [1, E] f32
    # --- output ---
    out_ref,               # [1, 1, E+2H+V] f32  (lane-dense slab: [mu | gru_out | h_new | proba])
):
    f32 = jnp.float32
    bf16 = jnp.bfloat16

    H = last_hidden_ref.shape[-1]
    E = embed_z_ref.shape[-1]
    T = u_enc_ref.shape[1]
    V = pv_pz_ref.shape[-1]

    h_prev = last_hidden_ref[0]           # [1, H]  f32
    enc = u_enc_ref[0]                    # [T, H]  bf16
    zdec = pv_z_dec_ref[0]                # [Tz, H] bf16
    pv_pz = pv_pz_ref[0]                  # [Tz, V] f32
    ez = embed_z_ref[0]                   # [1, E]  f32   (dropout == identity, eval)
    tok = u_tok_ref[0]                    # [T, 1]  int32

    # -------- fused h_prev matmul: attention hidden projection + GRU hidden gates --------
    hp = jnp.dot(h_prev, w_hprev_ref[...], preferred_element_type=f32) + b_hprev_ref[...]
    hid_b = hp[:, :H]                     # [1, H]   (= h_prev @ wa[:H] + ba)
    h_gates = hp[:, H:]                   # [1, 3H]  (= h_prev @ whh   + bhh)

    # -------- fused encoder matmul (bf16 operands, f32 accumulate) --------
    enc_proj = jnp.dot(enc, w_enc_ref[...], preferred_element_type=f32)   # [T, 2H]
    att_in = enc_proj[:, :H]              # attention branch  (wa[H:])
    ucp_in = enc_proj[:, H:]              # u-copy branch     (wc1[:H])

    # -------- attn_u(last_hidden, u_enc_out): tanh-MLP attention, softmax over T --------
    energy = jnp.tanh(att_in + hid_b)                                     # [T, H] f32
    att = jnp.dot(energy.astype(bf16), va_ref[...], preferred_element_type=f32)   # [T, 1]
    att = jnp.exp(att - jnp.max(att, axis=0, keepdims=True))
    att = att / jnp.sum(att, axis=0, keepdims=True)                       # exact division
    u_context = jnp.sum(att * enc.astype(f32), axis=0, keepdims=True)     # [1, H]

    # -------- GRU single step (input = [u_context ; embed_z]) --------
    wih = wih_ref[...]
    x_gates = (jnp.dot(u_context, wih[:H, :], preferred_element_type=f32)
               + jnp.dot(ez, wih[H:, :], preferred_element_type=f32)
               + bih_ref[...])                                            # [1, 3H]
    xr, xz, xn = x_gates[:, :H], x_gates[:, H:2 * H], x_gates[:, 2 * H:]
    hr, hz, hn = h_gates[:, :H], h_gates[:, H:2 * H], h_gates[:, 2 * H:]
    r = jax.nn.sigmoid(xr + hr)
    zg = jax.nn.sigmoid(xz + hz)
    n = jnp.tanh(xn + r * hn)
    h_new = (1.0 - zg) * n + zg * h_prev                                  # [1, H]

    # -------- LayerNormalization (unbiased std, eps on sigma) --------
    mean = jnp.mean(h_new, axis=-1, keepdims=True)
    diff = h_new - mean
    sigma = jnp.sqrt(jnp.sum(diff * diff, axis=-1, keepdims=True) / (H - 1))
    gru_out = diff / (sigma + LN_EPS) * gamma_ref[...] + beta_ref[...]    # [1, H]

    # -------- fused gru_out matmul: gen scores + both copy-gate projections --------
    go = jnp.dot(gru_out, w_gout_ref[...], preferred_element_type=f32) + b_gout_ref[...]
    gen = go[:, :V]                       # [1, V]
    g1 = go[:, V:V + H]                   # [1, H]  (wc1[H:] branch + bc1)
    g2 = go[:, V + H:]                    # [1, H]  (wc2[H:] branch + bc2)

    # -------- copy score over user-input encodings --------
    uc = jnp.tanh(ucp_in + g1)                                            # [T, H]
    ucopy = (jnp.dot(uc.astype(bf16), v1w_ref[...], preferred_element_type=f32)
             + copy_b_ref[:, 0:1])                                        # [T, 1]

    # -------- copy score over previous-z decoder outputs --------
    zp = jnp.dot(zdec, w_zdec_ref[...], preferred_element_type=f32)       # [Tz, H]
    zc = jnp.tanh(zp + g2)
    zcopy = (jnp.dot(zc.astype(bf16), v2w_ref[...], preferred_element_type=f32)
             + copy_b_ref[:, 1:2])                                        # [Tz, 1]

    # -------- joint softmax over concat([gen, ucopy, zcopy]) (exact division) --------
    m = jnp.maximum(jnp.max(gen, axis=1, keepdims=True),
                    jnp.maximum(jnp.max(ucopy, axis=0, keepdims=True),
                                jnp.max(zcopy, axis=0, keepdims=True)))    # [1, 1]
    gen_e = jnp.exp(gen - m)
    uce = jnp.exp(ucopy - m)
    zce = jnp.exp(zcopy - m)
    denom = (jnp.sum(gen_e, axis=1, keepdims=True)
             + jnp.sum(uce, axis=0, keepdims=True)
             + jnp.sum(zce, axis=0, keepdims=True))                        # [1, 1]
    gen_sm = gen_e / denom                # [1, V]
    uc_sm = uce / denom                   # [T, 1]
    zc_sm = zce / denom                   # [Tz, 1]

    # -------- mask_prob without dense [B,T,V] one-hot --------
    freq_mask = (lax.broadcasted_iota(jnp.int32, (1, V), 1) >= freq_thres).astype(f32)  # [1, V]
    onehot_mask = lax.broadcasted_iota(jnp.int32, (T, V), 1) == tok                      # [T, V] bool
    u_masked = jnp.sum(jnp.where(onehot_mask, uc_sm, 0.0), axis=0, keepdims=True)        # [1, V]
    z_masked = jnp.sum(zc_sm * pv_pz, axis=0, keepdims=True)                              # [1, V]

    # -------- combine + mu projection (copy_weight == 1) --------
    proba = gen_sm + (u_masked + z_masked) * freq_mask                     # [1, V]
    mu_ae = jnp.dot(proba, wmu_ref[...], preferred_element_type=f32) + bmu_ref[...]  # [1, E]

    # single lane-dense store of all outputs
    out_ref[0] = jnp.concatenate([mu_ae, gru_out, h_new, proba], axis=-1)  # [1, E+2H+V]


def _batch_spec(shape):
    """Slice along batch (dim 0), full extent on the remaining dims."""
    ndim = len(shape)
    return pl.BlockSpec((1,) + tuple(shape[1:]),
                        lambda b: (b,) + (0,) * (ndim - 1))


def _const_spec(shape):
    """Whole-array block, constant across the batch grid (weights / biases)."""
    ndim = len(shape)
    return pl.BlockSpec(tuple(shape), lambda b: (0,) * ndim)


def text_span_decoder_forward(params, u_enc_out, pv_pz_proba, pv_z_dec_out,
                              embed_z, last_hidden, u_input_tokens, freq_thres):
    """Mirrors TextSpanDecoder.forward (pv_pz_proba is not None branch).

    u_enc_out:      [T, B, H]
    pv_pz_proba:    [Tz, B, V]
    pv_z_dec_out:   [Tz, B, H]
    embed_z:        [1, B, E]
    last_hidden:    [1, B, H]
    u_input_tokens: [B, T] int32  (the kernel builds one_hot(u_input) == sparse_u_input itself)
    returns (mu_ae[1,B,E], gru_out[1,B,H], last_hidden[1,B,H], proba[B,V], mu_ae[B,E])
    """
    T, B, H = u_enc_out.shape
    Tz, _, V = pv_pz_proba.shape
    E = embed_z.shape[-1]
    f32, bf16 = jnp.float32, jnp.bfloat16

    # ---- layout plumbing (all hoisted out of the kernel) ----
    # shift(): prepend a zero step, drop last; then batch-major [B, Tz, V]
    pv_pz_shift = jnp.concatenate(
        [jnp.zeros((1, B, V), f32), pv_pz_proba[:-1].astype(f32)], axis=0)
    pv_pz_btv = jnp.transpose(pv_pz_shift, (1, 0, 2))                     # [B, Tz, V]

    enc_bth = jnp.transpose(u_enc_out, (1, 0, 2)).astype(bf16)            # [B, T, H]
    zdec_bth = jnp.transpose(pv_z_dec_out, (1, 0, 2)).astype(bf16)        # [B, Tz, H]
    h0 = jnp.transpose(last_hidden.astype(f32), (1, 0, 2))                # [B, 1, H]
    ez = jnp.transpose(embed_z.astype(f32), (1, 0, 2))                    # [B, 1, E]
    u_tok = u_input_tokens.astype(jnp.int32)[:, :, None]                  # [B, T, 1]

    # ---- shared-LHS weight fusion (done once, outside the kernel) ----
    wa, wc1, wc2 = params['wa'], params['wc1'], params['wc2']
    w_hprev = jnp.concatenate([wa[:H, :], params['whh']], axis=1)                       # [H, 4H]
    b_hprev = jnp.concatenate([params['ba'], params['bhh']], axis=1)                    # [1, 4H]
    w_enc = jnp.concatenate([wa[H:, :], wc1[:H, :]], axis=1).astype(bf16)               # [H, 2H]
    w_gout = jnp.concatenate([params['w1'], wc1[H:, :], wc2[H:, :]], axis=1)            # [H, V+2H]
    b_gout = jnp.concatenate([params['b1'], params['bc1'], params['bc2']], axis=1)      # [1, V+2H]
    w_zdec = wc2[:H, :].astype(bf16)                                                    # [H, H]
    va = params['va'].T.astype(bf16)                                                    # [H, 1]
    v1w = params['v1w'].T.astype(bf16)                                                  # [H, 1]
    v2w = params['v2w'].T.astype(bf16)                                                  # [H, 1]
    copy_b = jnp.concatenate([params['v1b'], params['v2b']], axis=1).astype(f32)        # [1, 2]

    total = E + 2 * H + V

    batch_inputs = [h0, enc_bth, ez, zdec_bth, pv_pz_btv, u_tok]
    const_inputs = [w_hprev, b_hprev, w_enc, va,
                    params['wih'], params['bih'], params['gamma'], params['beta'],
                    w_gout, b_gout, w_zdec, v1w, v2w, copy_b,
                    params['wmu'], params['bmu']]
    inputs = batch_inputs + const_inputs

    in_specs = ([_batch_spec(x.shape) for x in batch_inputs]
                + [_const_spec(x.shape) for x in const_inputs])
    out_spec = pl.BlockSpec((1, 1, total), lambda b: (b, 0, 0))

    kernel = functools.partial(text_span_decoder_kernel, int(freq_thres))

    slab = pl.pallas_call(
        kernel,
        out_shape=jax.ShapeDtypeStruct((B, 1, total), f32),
        grid=(B,),
        in_specs=in_specs,
        out_specs=out_spec,
        compiler_params=pltpu.CompilerParams(
            dimension_semantics=("parallel",),
            vmem_limit_bytes=32 * 1024 * 1024),
    )(*inputs)

    slab2d = slab[:, 0, :]                                                 # [B, E+2H+V]
    mu_ae = slab2d[:, :E]
    gru_out = slab2d[:, E:E + H]
    h_new = slab2d[:, E + H:E + 2 * H]
    proba = slab2d[:, E + 2 * H:]
    return mu_ae[None], gru_out[None], h_new[None], proba, mu_ae


def init_params(key, E, H, V):
    """Deterministic parameter init (shapes match the PyTorch module; weights stored
    transposed as [in, out] for y = x @ W + b)."""
    ks = jax.random.split(key, 19)

    def u(k, shape, fan_in):
        s = 1.0 / math.sqrt(fan_in)
        return jax.random.uniform(k, shape, jnp.float32, -s, s)

    p = {}
    # Attn(hidden_size): attn = Linear(2H, H), v = Parameter(H)
    p['wa'] = u(ks[0], (2 * H, H), 2 * H)
    p['ba'] = u(ks[1], (1, H), 2 * H)
    p['va'] = jax.random.normal(ks[2], (1, H), jnp.float32) / math.sqrt(H)
    # GRU(E+H -> H); gate order [r|z|n] along the 3H axis
    # TODO(synk): orth_gru's orthogonal hidden-hidden init approximated with uniform (init-only, no forward effect).
    p['wih'] = u(ks[3], (H + E, 3 * H), H)
    p['bih'] = u(ks[4], (1, 3 * H), H)
    p['whh'] = u(ks[5], (H, 3 * H), H)
    p['bhh'] = u(ks[6], (1, 3 * H), H)
    # LayerNormalization
    p['gamma'] = jnp.ones((1, H), jnp.float32)
    p['beta'] = jnp.zeros((1, H), jnp.float32)
    # w1: Linear(H, V)
    p['w1'] = u(ks[7], (H, V), H)
    p['b1'] = u(ks[8], (1, V), H)
    # proj_copy1: Linear(2H, H), v1: Linear(H, 1)
    p['wc1'] = u(ks[9], (2 * H, H), 2 * H)
    p['bc1'] = u(ks[10], (1, H), 2 * H)
    p['v1w'] = u(ks[11], (1, H), H)
    p['v1b'] = u(ks[12], (1, 1), H)
    # proj_copy2: Linear(2H, H), v2: Linear(H, 1)
    p['wc2'] = u(ks[13], (2 * H, H), 2 * H)
    p['bc2'] = u(ks[14], (1, H), 2 * H)
    p['v2w'] = u(ks[15], (1, H), H)
    p['v2b'] = u(ks[16], (1, 1), H)
    # mu: Linear(V, E)
    p['wmu'] = u(ks[17], (V, E), V)
    p['bmu'] = u(ks[18], (1, E), V)
    return p


if __name__ == "__main__":
    B, T, Tz, H, E, V = 2, 8, 8, 32, 32, 64
    freq_thres = 4

    key = jax.random.PRNGKey(0)
    kp, kd = jax.random.split(key)
    params = init_params(kp, E, H, V)

    ks = jax.random.split(kd, 6)
    u_enc_out = jax.random.normal(ks[0], (T, B, H), jnp.float32)
    last_hidden = jax.random.normal(ks[1], (1, B, H), jnp.float32)
    embed_z = jax.random.normal(ks[2], (1, B, E), jnp.float32)
    pv_z_dec_out = jax.random.normal(ks[3], (Tz, B, H), jnp.float32)
    pv_pz_proba = jax.nn.softmax(
        jax.random.normal(ks[4], (Tz, B, V), jnp.float32), axis=-1)
    u_input_tokens = jax.random.randint(ks[5], (B, T), 0, V)   # kernel one-hots these itself

    outs = text_span_decoder_forward(params, u_enc_out, pv_pz_proba,
                                     pv_z_dec_out, embed_z, last_hidden,
                                     u_input_tokens, freq_thres)
    jax.block_until_ready(outs)

    mu_ae_u, gru_out, new_hidden, proba, mu_ae = outs
    assert mu_ae_u.shape == (1, B, E)
    assert gru_out.shape == (1, B, H)
    assert new_hidden.shape == (1, B, H)
    assert proba.shape == (B, V)
    assert mu_ae.shape == (B, E)
    assert bool(jnp.all(jnp.isfinite(proba)))
    print("KERNEL_OK")
</pallas_src>

<mosaic_0001>
module attributes {stable_mosaic.version = 11 : i64} {
  func.func @text_span_decoder_kernel(%arg0: i32, %arg1: memref<1x1x32xf32, #tpu.memory_space<vmem>>, %arg2: memref<1x8x32xbf16, #tpu.memory_space<vmem>>, %arg3: memref<1x1x32xf32, #tpu.memory_space<vmem>>, %arg4: memref<1x8x32xbf16, #tpu.memory_space<vmem>>, %arg5: memref<1x8x64xf32, #tpu.memory_space<vmem>>, %arg6: memref<1x8x1xi32, #tpu.memory_space<vmem>>, %arg7: memref<32x128xf32, #tpu.memory_space<vmem>>, %arg8: memref<1x128xf32, #tpu.memory_space<vmem>>, %arg9: memref<32x64xbf16, #tpu.memory_space<vmem>>, %arg10: memref<32x1xbf16, #tpu.memory_space<vmem>>, %arg11: memref<64x96xf32, #tpu.memory_space<vmem>>, %arg12: memref<1x96xf32, #tpu.memory_space<vmem>>, %arg13: memref<1x32xf32, #tpu.memory_space<vmem>>, %arg14: memref<1x32xf32, #tpu.memory_space<vmem>>, %arg15: memref<32x128xf32, #tpu.memory_space<vmem>>, %arg16: memref<1x128xf32, #tpu.memory_space<vmem>>, %arg17: memref<32x32xbf16, #tpu.memory_space<vmem>>, %arg18: memref<32x1xbf16, #tpu.memory_space<vmem>>, %arg19: memref<32x1xbf16, #tpu.memory_space<vmem>>, %arg20: memref<1x2xf32, #tpu.memory_space<vmem>>, %arg21: memref<64x32xf32, #tpu.memory_space<vmem>>, %arg22: memref<1x32xf32, #tpu.memory_space<vmem>>, %arg23: memref<1x1x160xf32, #tpu.memory_space<vmem>>) attributes {dimension_semantics = [#tpu.dimension_semantics<parallel>], iteration_bounds = array<i64: 2>, scalar_prefetch = 0 : i64, scratch_operands = 0 : i64, tpu.core_type = #tpu.core_type<tc>, window_params = [{transform_indices = @transform_0, window_bounds = array<i64: 1, 1, 32>}, {transform_indices = @transform_1, window_bounds = array<i64: 1, 8, 32>}, {transform_indices = @transform_2, window_bounds = array<i64: 1, 1, 32>}, {transform_indices = @transform_3, window_bounds = array<i64: 1, 8, 32>}, {transform_indices = @transform_4, window_bounds = array<i64: 1, 8, 64>}, {transform_indices = @transform_5, window_bounds = array<i64: 1, 8, 1>}, {pipeline_mode = #tpu.pipeline_mode<synchronous>, transform_indices = @transform_6, window_bounds = array<i64: 32, 128>}, {pipeline_mode = #tpu.pipeline_mode<synchronous>, transform_indices = @transform_7, window_bounds = array<i64: 1, 128>}, {pipeline_mode = #tpu.pipeline_mode<synchronous>, transform_indices = @transform_8, window_bounds = array<i64: 32, 64>}, {pipeline_mode = #tpu.pipeline_mode<synchronous>, transform_indices = @transform_9, window_bounds = array<i64: 32, 1>}, {pipeline_mode = #tpu.pipeline_mode<synchronous>, transform_indices = @transform_10, window_bounds = array<i64: 64, 96>}, {pipeline_mode = #tpu.pipeline_mode<synchronous>, transform_indices = @transform_11, window_bounds = array<i64: 1, 96>}, {pipeline_mode = #tpu.pipeline_mode<synchronous>, transform_indices = @transform_12, window_bounds = array<i64: 1, 32>}, {pipeline_mode = #tpu.pipeline_mode<synchronous>, transform_indices = @transform_13, window_bounds = array<i64: 1, 32>}, {pipeline_mode = #tpu.pipeline_mode<synchronous>, transform_indices = @transform_14, window_bounds = array<i64: 32, 128>}, {pipeline_mode = #tpu.pipeline_mode<synchronous>, transform_indices = @transform_15, window_bounds = array<i64: 1, 128>}, {pipeline_mode = #tpu.pipeline_mode<synchronous>, transform_indices = @transform_16, window_bounds = array<i64: 32, 32>}, {pipeline_mode = #tpu.pipeline_mode<synchronous>, transform_indices = @transform_17, window_bounds = array<i64: 32, 1>}, {pipeline_mode = #tpu.pipeline_mode<synchronous>, transform_indices = @transform_18, window_bounds = array<i64: 32, 1>}, {pipeline_mode = #tpu.pipeline_mode<synchronous>, transform_indices = @transform_19, window_bounds = array<i64: 1, 2>}, {pipeline_mode = #tpu.pipeline_mode<synchronous>, transform_indices = @transform_20, window_bounds = array<i64: 64, 32>}, {pipeline_mode = #tpu.pipeline_mode<synchronous>, transform_indices = @transform_21, window_bounds = array<i64: 1, 32>}, {transform_indices = @transform_22, window_bounds = array<i64: 1, 1, 160>}]} {
    %c0 = arith.constant 0 : index
    %c0_0 = arith.constant 0 : index
    %c0_1 = arith.constant 0 : index
    %0 = vector.load %arg1[%c0, %c0_0, %c0_1] : memref<1x1x32xf32, #tpu.memory_space<vmem>>, vector<1x1x32xf32>
    %1 = vector.shape_cast %0 : vector<1x1x32xf32> to vector<1x32xf32>
    %c0_2 = arith.constant 0 : index
    %c0_3 = arith.constant 0 : index
    %c0_4 = arith.constant 0 : index
    %2 = vector.load %arg2[%c0_2, %c0_3, %c0_4] : memref<1x8x32xbf16, #tpu.memory_space<vmem>>, vector<1x8x32xbf16>
    %3 = vector.shape_cast %2 : vector<1x8x32xbf16> to vector<8x32xbf16>
    %c0_5 = arith.constant 0 : index
    %c0_6 = arith.constant 0 : index
    %c0_7 = arith.constant 0 : index
    %4 = vector.load %arg4[%c0_5, %c0_6, %c0_7] : memref<1x8x32xbf16, #tpu.memory_space<vmem>>, vector<1x8x32xbf16>
    %5 = vector.shape_cast %4 : vector<1x8x32xbf16> to vector<8x32xbf16>
    %c0_8 = arith.constant 0 : index
    %c0_9 = arith.constant 0 : index
    %c0_10 = arith.constant 0 : index
    %6 = vector.load %arg5[%c0_8, %c0_9, %c0_10] : memref<1x8x64xf32, #tpu.memory_space<vmem>>, vector<1x8x64xf32>
    %7 = vector.shape_cast %6 : vector<1x8x64xf32> to vector<8x64xf32>
    %c0_11 = arith.constant 0 : index
    %c0_12 = arith.constant 0 : index
    %c0_13 = arith.constant 0 : index
    %8 = vector.load %arg3[%c0_11, %c0_12, %c0_13] : memref<1x1x32xf32, #tpu.memory_space<vmem>>, vector<1x1x32xf32>
    %9 = vector.shape_cast %8 : vector<1x1x32xf32> to vector<1x32xf32>
    %c0_14 = arith.constant 0 : index
    %c0_15 = arith.constant 0 : index
    %c0_16 = arith.constant 0 : index
    %10 = vector.load %arg6[%c0_14, %c0_15, %c0_16] : memref<1x8x1xi32, #tpu.memory_space<vmem>>, vector<1x8x1xi32>
    %11 = vector.shape_cast %10 : vector<1x8x1xi32> to vector<8x1xi32>
    %c0_17 = arith.constant 0 : index
    %c0_18 = arith.constant 0 : index
    %12 = vector.load %arg7[%c0_17, %c0_18] : memref<32x128xf32, #tpu.memory_space<vmem>>, vector<32x128xf32>
    %cst = arith.constant dense<0.000000e+00> : vector<1x128xf32>
    %13 = tpu.matmul %1, %12, %cst {dimension_numbers = #tpu.dot_dimension_numbers<[1], [0], [0], [1], [0, 0, 1, 1], [], []>} : vector<1x32xf32>, vector<32x128xf32>, vector<1x128xf32> -> vector<1x128xf32>
    %c0_19 = arith.constant 0 : index
    %c0_20 = arith.constant 0 : index
    %14 = vector.load %arg8[%c0_19, %c0_20] : memref<1x128xf32, #tpu.memory_space<vmem>>, vector<1x128xf32>
    %15 = arith.addf %13, %14 : vector<1x128xf32>
    %16 = vector.extract_strided_slice %15 {offsets = [0, 0], sizes = [1, 32], strides = [1, 1]} : vector<1x128xf32> to vector<1x32xf32>
    %17 = vector.extract_strided_slice %15 {offsets = [0, 32], sizes = [1, 96], strides = [1, 1]} : vector<1x128xf32> to vector<1x96xf32>
    %c0_21 = arith.constant 0 : index
    %c0_22 = arith.constant 0 : index
    %18 = vector.load %arg9[%c0_21, %c0_22] : memref<32x64xbf16, #tpu.memory_space<vmem>>, vector<32x64xbf16>
    %cst_23 = arith.constant dense<0.000000e+00> : vector<8x64xf32>
    %19 = tpu.matmul %3, %18, %cst_23 {dimension_numbers = #tpu.dot_dimension_numbers<[1], [0], [0], [1], [0, 0, 1, 1], [], []>} : vector<8x32xbf16>, vector<32x64xbf16>, vector<8x64xf32> -> vector<8x64xf32>
    %20 = vector.extract_strided_slice %19 {offsets = [0, 0], sizes = [8, 32], strides = [1, 1]} : vector<8x64xf32> to vector<8x32xf32>
    %21 = vector.extract_strided_slice %19 {offsets = [0, 32], sizes = [8, 32], strides = [1, 1]} : vector<8x64xf32> to vector<8x32xf32>
    %22 = vector.broadcast %16 : vector<1x32xf32> to vector<8x32xf32>
    %23 = arith.addf %20, %22 : vector<8x32xf32>
    %24 = math.tanh %23 : vector<8x32xf32>
    %25 = arith.truncf %24 : vector<8x32xf32> to vector<8x32xbf16>
    %c0_24 = arith.constant 0 : index
    %c0_25 = arith.constant 0 : index
    %26 = vector.load %arg10[%c0_24, %c0_25] : memref<32x1xbf16, #tpu.memory_space<vmem>>, vector<32x1xbf16>
    %cst_26 = arith.constant dense<0.000000e+00> : vector<8x1xf32>
    %27 = tpu.matmul %25, %26, %cst_26 {dimension_numbers = #tpu.dot_dimension_numbers<[1], [0], [0], [1], [0, 0, 1, 1], [], []>} : vector<8x32xbf16>, vector<32x1xbf16>, vector<8x1xf32> -> vector<8x1xf32>
    %cst_27 = arith.constant dense<0xFF800000> : vector<1xf32>
    %28 = vector.multi_reduction <maximumf>, %27, %cst_27 [0] : vector<8x1xf32> to vector<1xf32>
    %29 = vector.shape_cast %28 : vector<1xf32> to vector<1x1xf32>
    %30 = vector.broadcast %29 : vector<1x1xf32> to vector<8x1xf32>
    %31 = arith.subf %27, %30 : vector<8x1xf32>
    %32 = math.exp %31 : vector<8x1xf32>
    %cst_28 = arith.constant dense<0.000000e+00> : vector<1xf32>
    %33 = vector.multi_reduction <add>, %32, %cst_28 [0] : vector<8x1xf32> to vector<1xf32>
    %34 = vector.shape_cast %33 : vector<1xf32> to vector<1x1xf32>
    %35 = vector.broadcast %34 : vector<1x1xf32> to vector<8x1xf32>
    %36 = arith.divf %32, %35 : vector<8x1xf32>
    %37 = arith.extf %3 : vector<8x32xbf16> to vector<8x32xf32>
    %38 = vector.broadcast %36 : vector<8x1xf32> to vector<8x32xf32>
    %39 = arith.mulf %38, %37 : vector<8x32xf32>
    %cst_29 = arith.constant dense<0.000000e+00> : vector<32xf32>
    %40 = vector.multi_reduction <add>, %39, %cst_29 [0] : vector<8x32xf32> to vector<32xf32>
    %41 = vector.shape_cast %40 : vector<32xf32> to vector<1x32xf32>
    %c0_30 = arith.constant 0 : index
    %c0_31 = arith.constant 0 : index
    %42 = vector.load %arg11[%c0_30, %c0_31] : memref<64x96xf32, #tpu.memory_space<vmem>>, vector<64x96xf32>
    %43 = vector.extract_strided_slice %42 {offsets = [0, 0], sizes = [32, 96], strides = [1, 1]} : vector<64x96xf32> to vector<32x96xf32>
    %cst_32 = arith.constant dense<0.000000e+00> : vector<1x96xf32>
    %44 = tpu.matmul %41, %43, %cst_32 {dimension_numbers = #tpu.dot_dimension_numbers<[1], [0], [0], [1], [0, 0, 1, 1], [], []>} : vector<1x32xf32>, vector<32x96xf32>, vector<1x96xf32> -> vector<1x96xf32>
    %45 = vector.extract_strided_slice %42 {offsets = [32, 0], sizes = [32, 96], strides = [1, 1]} : vector<64x96xf32> to vector<32x96xf32>
    %cst_33 = arith.constant dense<0.000000e+00> : vector<1x96xf32>
    %46 = tpu.matmul %9, %45, %cst_33 {dimension_numbers = #tpu.dot_dimension_numbers<[1], [0], [0], [1], [0, 0, 1, 1], [], []>} : vector<1x32xf32>, vector<32x96xf32>, vector<1x96xf32> -> vector<1x96xf32>
    %47 = arith.addf %44, %46 : vector<1x96xf32>
    %c0_34 = arith.constant 0 : index
    %c0_35 = arith.constant 0 : index
    %48 = vector.load %arg12[%c0_34, %c0_35] : memref<1x96xf32, #tpu.memory_space<vmem>>, vector<1x96xf32>
    %49 = arith.addf %47, %48 : vector<1x96xf32>
    %50 = vector.extract_strided_slice %49 {offsets = [0, 0], sizes = [1, 32], strides = [1, 1]} : vector<1x96xf32> to vector<1x32xf32>
    %51 = vector.extract_strided_slice %49 {offsets = [0, 32], sizes = [1, 32], strides = [1, 1]} : vector<1x96xf32> to vector<1x32xf32>
    %52 = vector.extract_strided_slice %49 {offsets = [0, 64], sizes = [1, 32], strides = [1, 1]} : vector<1x96xf32> to vector<1x32xf32>
    %53 = vector.extract_strided_slice %17 {offsets = [0, 0], sizes = [1, 32], strides = [1, 1]} : vector<1x96xf32> to vector<1x32xf32>
    %54 = vector.extract_strided_slice %17 {offsets = [0, 32], sizes = [1, 32], strides = [1, 1]} : vector<1x96xf32> to vector<1x32xf32>
    %55 = vector.extract_strided_slice %17 {offsets = [0, 64], sizes = [1, 32], strides = [1, 1]} : vector<1x96xf32> to vector<1x32xf32>
    %56 = arith.addf %50, %53 : vector<1x32xf32>
    %57 = arith.negf %56 : vector<1x32xf32>
    %58 = math.exp %57 : vector<1x32xf32>
    %cst_36 = arith.constant 1.000000e+00 : f32
    %59 = vector.broadcast %cst_36 : f32 to vector<1x32xf32>
    %60 = arith.addf %59, %58 : vector<1x32xf32>
    %61 = arith.divf %59, %60 : vector<1x32xf32>
    %62 = arith.addf %51, %54 : vector<1x32xf32>
    %63 = arith.negf %62 : vector<1x32xf32>
    %64 = math.exp %63 : vector<1x32xf32>
    %cst_37 = arith.constant 1.000000e+00 : f32
    %65 = vector.broadcast %cst_37 : f32 to vector<1x32xf32>
    %66 = arith.addf %65, %64 : vector<1x32xf32>
    %67 = arith.divf %65, %66 : vector<1x32xf32>
    %68 = arith.mulf %61, %55 : vector<1x32xf32>
    %69 = arith.addf %52, %68 : vector<1x32xf32>
    %70 = math.tanh %69 : vector<1x32xf32>
    %cst_38 = arith.constant 1.000000e+00 : f32
    %71 = vector.broadcast %cst_38 : f32 to vector<1x32xf32>
    %72 = arith.subf %71, %67 : vector<1x32xf32>
    %73 = arith.mulf %72, %70 : vector<1x32xf32>
    %74 = arith.mulf %67, %1 : vector<1x32xf32>
    %75 = arith.addf %73, %74 : vector<1x32xf32>
    %cst_39 = arith.constant dense<0.000000e+00> : vector<1xf32>
    %76 = vector.multi_reduction <add>, %75, %cst_39 [1] : vector<1x32xf32> to vector<1xf32>
    %77 = vector.shape_cast %76 : vector<1xf32> to vector<1x1xf32>
    %cst_40 = arith.constant 3.200000e+01 : f32
    %78 = vector.broadcast %cst_40 : f32 to vector<1x1xf32>
    %79 = arith.divf %77, %78 : vector<1x1xf32>
    %80 = vector.broadcast %79 : vector<1x1xf32> to vector<1x32xf32>
    %81 = arith.subf %75, %80 : vector<1x32xf32>
    %82 = arith.mulf %81, %81 : vector<1x32xf32>
    %cst_41 = arith.constant dense<0.000000e+00> : vector<1xf32>
    %83 = vector.multi_reduction <add>, %82, %cst_41 [1] : vector<1x32xf32> to vector<1xf32>
    %84 = vector.shape_cast %83 : vector<1xf32> to vector<1x1xf32>
    %cst_42 = arith.constant 3.100000e+01 : f32
    %85 = vector.broadcast %cst_42 : f32 to vector<1x1xf32>
    %86 = arith.divf %84, %85 : vector<1x1xf32>
    %87 = math.sqrt %86 : vector<1x1xf32>
    %cst_43 = arith.constant 1.000000e-03 : f32
    %88 = vector.broadcast %cst_43 : f32 to vector<1x1xf32>
    %89 = arith.addf %87, %88 : vector<1x1xf32>
    %90 = vector.broadcast %89 : vector<1x1xf32> to vector<1x32xf32>
    %91 = arith.divf %81, %90 : vector<1x32xf32>
    %c0_44 = arith.constant 0 : index
    %c0_45 = arith.constant 0 : index
    %92 = vector.load %arg13[%c0_44, %c0_45] : memref<1x32xf32, #tpu.memory_space<vmem>>, vector<1x32xf32>
    %93 = arith.mulf %91, %92 : vector<1x32xf32>
    %c0_46 = arith.constant 0 : index
    %c0_47 = arith.constant 0 : index
    %94 = vector.load %arg14[%c0_46, %c0_47] : memref<1x32xf32, #tpu.memory_space<vmem>>, vector<1x32xf32>
    %95 = arith.addf %93, %94 : vector<1x32xf32>
    %c0_48 = arith.constant 0 : index
    %c0_49 = arith.constant 0 : index
    %96 = vector.load %arg15[%c0_48, %c0_49] : memref<32x128xf32, #tpu.memory_space<vmem>>, vector<32x128xf32>
    %cst_50 = arith.constant dense<0.000000e+00> : vector<1x128xf32>
    %97 = tpu.matmul %95, %96, %cst_50 {dimension_numbers = #tpu.dot_dimension_numbers<[1], [0], [0], [1], [0, 0, 1, 1], [], []>} : vector<1x32xf32>, vector<32x128xf32>, vector<1x128xf32> -> vector<1x128xf32>
    %c0_51 = arith.constant 0 : index
    %c0_52 = arith.constant 0 : index
    %98 = vector.load %arg16[%c0_51, %c0_52] : memref<1x128xf32, #tpu.memory_space<vmem>>, vector<1x128xf32>
    %99 = arith.addf %97, %98 : vector<1x128xf32>
    %100 = vector.extract_strided_slice %99 {offsets = [0, 0], sizes = [1, 64], strides = [1, 1]} : vector<1x128xf32> to vector<1x64xf32>
    %101 = vector.extract_strided_slice %99 {offsets = [0, 64], sizes = [1, 32], strides = [1, 1]} : vector<1x128xf32> to vector<1x32xf32>
    %102 = vector.extract_strided_slice %99 {offsets = [0, 96], sizes = [1, 32], strides = [1, 1]} : vector<1x128xf32> to vector<1x32xf32>
    %103 = vector.broadcast %101 : vector<1x32xf32> to vector<8x32xf32>
    %104 = arith.addf %21, %103 : vector<8x32xf32>
    %105 = math.tanh %104 : vector<8x32xf32>
    %106 = arith.truncf %105 : vector<8x32xf32> to vector<8x32xbf16>
    %c0_53 = arith.constant 0 : index
    %c0_54 = arith.constant 0 : index
    %107 = vector.load %arg18[%c0_53, %c0_54] : memref<32x1xbf16, #tpu.memory_space<vmem>>, vector<32x1xbf16>
    %cst_55 = arith.constant dense<0.000000e+00> : vector<8x1xf32>
    %108 = tpu.matmul %106, %107, %cst_55 {dimension_numbers = #tpu.dot_dimension_numbers<[1], [0], [0], [1], [0, 0, 1, 1], [], []>} : vector<8x32xbf16>, vector<32x1xbf16>, vector<8x1xf32> -> vector<8x1xf32>
    %c0_56 = arith.constant 0 : index
    %c0_57 = arith.constant 0 : index
    %109 = vector.load %arg20[%c0_56, %c0_57] : memref<1x2xf32, #tpu.memory_space<vmem>>, vector<1x1xf32>
    %110 = vector.broadcast %109 : vector<1x1xf32> to vector<8x1xf32>
    %111 = arith.addf %108, %110 : vector<8x1xf32>
    %c0_58 = arith.constant 0 : index
    %c0_59 = arith.constant 0 : index
    %112 = vector.load %arg17[%c0_58, %c0_59] : memref<32x32xbf16, #tpu.memory_space<vmem>>, vector<32x32xbf16>
    %cst_60 = arith.constant dense<0.000000e+00> : vector<8x32xf32>
    %113 = tpu.matmul %5, %112, %cst_60 {dimension_numbers = #tpu.dot_dimension_numbers<[1], [0], [0], [1], [0, 0, 1, 1], [], []>} : vector<8x32xbf16>, vector<32x32xbf16>, vector<8x32xf32> -> vector<8x32xf32>
    %114 = vector.broadcast %102 : vector<1x32xf32> to vector<8x32xf32>
    %115 = arith.addf %113, %114 : vector<8x32xf32>
    %116 = math.tanh %115 : vector<8x32xf32>
    %117 = arith.truncf %116 : vector<8x32xf32> to vector<8x32xbf16>
    %c0_61 = arith.constant 0 : index
    %c0_62 = arith.constant 0 : index
    %118 = vector.load %arg19[%c0_61, %c0_62] : memref<32x1xbf16, #tpu.memory_space<vmem>>, vector<32x1xbf16>
    %cst_63 = arith.constant dense<0.000000e+00> : vector<8x1xf32>
    %119 = tpu.matmul %117, %118, %cst_63 {dimension_numbers = #tpu.dot_dimension_numbers<[1], [0], [0], [1], [0, 0, 1, 1], [], []>} : vector<8x32xbf16>, vector<32x1xbf16>, vector<8x1xf32> -> vector<8x1xf32>
    %c0_64 = arith.constant 0 : index
    %c1 = arith.constant 1 : index
    %120 = vector.load %arg20[%c0_64, %c1] : memref<1x2xf32, #tpu.memory_space<vmem>>, vector<1x1xf32>
    %121 = vector.broadcast %120 : vector<1x1xf32> to vector<8x1xf32>
    %122 = arith.addf %119, %121 : vector<8x1xf32>
    %cst_65 = arith.constant dense<0xFF800000> : vector<1xf32>
    %123 = vector.multi_reduction <maximumf>, %100, %cst_65 [1] : vector<1x64xf32> to vector<1xf32>
    %124 = vector.shape_cast %123 : vector<1xf32> to vector<1x1xf32>
    %cst_66 = arith.constant dense<0xFF800000> : vector<1xf32>
    %125 = vector.multi_reduction <maximumf>, %111, %cst_66 [0] : vector<8x1xf32> to vector<1xf32>
    %126 = vector.shape_cast %125 : vector<1xf32> to vector<1x1xf32>
    %cst_67 = arith.constant dense<0xFF800000> : vector<1xf32>
    %127 = vector.multi_reduction <maximumf>, %122, %cst_67 [0] : vector<8x1xf32> to vector<1xf32>
    %128 = vector.shape_cast %127 : vector<1xf32> to vector<1x1xf32>
    %129 = arith.maximumf %126, %128 : vector<1x1xf32>
    %130 = arith.maximumf %124, %129 : vector<1x1xf32>
    %131 = vector.broadcast %130 : vector<1x1xf32> to vector<1x64xf32>
    %132 = arith.subf %100, %131 : vector<1x64xf32>
    %133 = math.exp %132 : vector<1x64xf32>
    %134 = vector.broadcast %130 : vector<1x1xf32> to vector<8x1xf32>
    %135 = arith.subf %111, %134 : vector<8x1xf32>
    %136 = math.exp %135 : vector<8x1xf32>
    %137 = vector.broadcast %130 : vector<1x1xf32> to vector<8x1xf32>
    %138 = arith.subf %122, %137 : vector<8x1xf32>
    %139 = math.exp %138 : vector<8x1xf32>
    %cst_68 = arith.constant dense<0.000000e+00> : vector<1xf32>
    %140 = vector.multi_reduction <add>, %133, %cst_68 [1] : vector<1x64xf32> to vector<1xf32>
    %141 = vector.shape_cast %140 : vector<1xf32> to vector<1x1xf32>
    %cst_69 = arith.constant dense<0.000000e+00> : vector<1xf32>
    %142 = vector.multi_reduction <add>, %136, %cst_69 [0] : vector<8x1xf32> to vector<1xf32>
    %143 = vector.shape_cast %142 : vector<1xf32> to vector<1x1xf32>
    %144 = arith.addf %141, %143 : vector<1x1xf32>
    %cst_70 = arith.constant dense<0.000000e+00> : vector<1xf32>
    %145 = vector.multi_reduction <add>, %139, %cst_70 [0] : vector<8x1xf32> to vector<1xf32>
    %146 = vector.shape_cast %145 : vector<1xf32> to vector<1x1xf32>
    %147 = arith.addf %144, %146 : vector<1x1xf32>
    %148 = vector.broadcast %147 : vector<1x1xf32> to vector<1x64xf32>
    %149 = arith.divf %133, %148 : vector<1x64xf32>
    %150 = vector.broadcast %147 : vector<1x1xf32> to vector<8x1xf32>
    %151 = arith.divf %136, %150 : vector<8x1xf32>
    %152 = vector.broadcast %147 : vector<1x1xf32> to vector<8x1xf32>
    %153 = arith.divf %139, %152 : vector<8x1xf32>
    %154 = tpu.iota {dimensions = array<i32: 1>} : vector<1x64xi32>
    %c4_i32 = arith.constant 4 : i32
    %155 = vector.broadcast %c4_i32 : i32 to vector<1x64xi32>
    %156 = arith.cmpi sge, %154, %155 : vector<1x64xi32>
    %157 = arith.extui %156 : vector<1x64xi1> to vector<1x64xi32>
    %158 = arith.sitofp %157 : vector<1x64xi32> to vector<1x64xf32>
    %159 = tpu.iota {dimensions = array<i32: 1>} : vector<8x64xi32>
    %160 = vector.broadcast %11 : vector<8x1xi32> to vector<8x64xi32>
    %161 = arith.cmpi eq, %159, %160 : vector<8x64xi32>
    %cst_71 = arith.constant 0.000000e+00 : f32
    %162 = vector.shape_cast %151 : vector<8x1xf32> to vector<8x1xf32>
    %163 = vector.broadcast %162 : vector<8x1xf32> to vector<8x64xf32>
    %164 = vector.broadcast %cst_71 : f32 to vector<8x64xf32>
    %165 = arith.select %161, %163, %164 : vector<8x64xi1>, vector<8x64xf32>
    %cst_72 = arith.constant dense<0.000000e+00> : vector<64xf32>
    %166 = vector.multi_reduction <add>, %165, %cst_72 [0] : vector<8x64xf32> to vector<64xf32>
    %167 = vector.shape_cast %166 : vector<64xf32> to vector<1x64xf32>
    %168 = vector.broadcast %153 : vector<8x1xf32> to vector<8x64xf32>
    %169 = arith.mulf %168, %7 : vector<8x64xf32>
    %cst_73 = arith.constant dense<0.000000e+00> : vector<64xf32>
    %170 = vector.multi_reduction <add>, %169, %cst_73 [0] : vector<8x64xf32> to vector<64xf32>
    %171 = vector.shape_cast %170 : vector<64xf32> to vector<1x64xf32>
    %172 = arith.addf %167, %171 : vector<1x64xf32>
    %173 = arith.mulf %172, %158 : vector<1x64xf32>
    %174 = arith.addf %149, %173 : vector<1x64xf32>
    %c0_74 = arith.constant 0 : index
    %c0_75 = arith.constant 0 : index
    %175 = vector.load %arg21[%c0_74, %c0_75] : memref<64x32xf32, #tpu.memory_space<vmem>>, vector<64x32xf32>
    %cst_76 = arith.constant dense<0.000000e+00> : vector<1x32xf32>
    %176 = tpu.matmul %174, %175, %cst_76 {dimension_numbers = #tpu.dot_dimension_numbers<[1], [0], [0], [1], [0, 0, 1, 1], [], []>} : vector<1x64xf32>, vector<64x32xf32>, vector<1x32xf32> -> vector<1x32xf32>
    %c0_77 = arith.constant 0 : index
    %c0_78 = arith.constant 0 : index
    %177 = vector.load %arg22[%c0_77, %c0_78] : memref<1x32xf32, #tpu.memory_space<vmem>>, vector<1x32xf32>
    %178 = arith.addf %176, %177 : vector<1x32xf32>
    %179 = tpu.concatenate %178, %95, %75, %174 in 1 : vector<1x32xf32>, vector<1x32xf32>, vector<1x32xf32>, vector<1x64xf32> -> vector<1x160xf32>
    %c0_79 = arith.constant 0 : index
    %c0_80 = arith.constant 0 : index
    %c0_81 = arith.constant 0 : index
    %180 = vector.load %arg23[%c0_79, %c0_80, %c0_81] : memref<1x1x160xf32, #tpu.memory_space<vmem>>, vector<1x1x160xf32>
    %181 = vector.shape_cast %180 : vector<1x1x160xf32> to vector<1x160xf32>
    %182 = vector.shape_cast %179 : vector<1x160xf32> to vector<1x1x160xf32>
    tpu.vector_store %arg23[%c0_79, %c0_80, %c0_81], %182 {strides = array<i32>} : memref<1x1x160xf32, #tpu.memory_space<vmem>>, vector<1x1x160xf32>,
    return
  }
  func.func @transform_0(%arg0: i32) -> (i32, i32, i32) {
    %c0_i32 = arith.constant 0 : i32
    %c0_i32_0 = arith.constant 0 : i32
    %c0_i32_1 = arith.constant 0 : i32
    return %arg0, %c0_i32, %c0_i32_0 : i32, i32, i32
  }
  func.func @transform_1(%arg0: i32) -> (i32, i32, i32) {
    %c0_i32 = arith.constant 0 : i32
    %c0_i32_0 = arith.constant 0 : i32
    %c0_i32_1 = arith.constant 0 : i32
    return %arg0, %c0_i32, %c0_i32_0 : i32, i32, i32
  }
  func.func @transform_2(%arg0: i32) -> (i32, i32, i32) {
    %c0_i32 = arith.constant 0 : i32
    %c0_i32_0 = arith.constant 0 : i32
    %c0_i32_1 = arith.constant 0 : i32
    return %arg0, %c0_i32, %c0_i32_0 : i32, i32, i32
  }
  func.func @transform_3(%arg0: i32) -> (i32, i32, i32) {
    %c0_i32 = arith.constant 0 : i32
    %c0_i32_0 = arith.constant 0 : i32
    %c0_i32_1 = arith.constant 0 : i32
    return %arg0, %c0_i32, %c0_i32_0 : i32, i32, i32
  }
  func.func @transform_4(%arg0: i32) -> (i32, i32, i32) {
    %c0_i32 = arith.constant 0 : i32
    %c0_i32_0 = arith.constant 0 : i32
    %c0_i32_1 = arith.constant 0 : i32
    return %arg0, %c0_i32, %c0_i32_0 : i32, i32, i32
  }
  func.func @transform_5(%arg0: i32) -> (i32, i32, i32) {
    %c0_i32 = arith.constant 0 : i32
    %c0_i32_0 = arith.constant 0 : i32
    %c0_i32_1 = arith.constant 0 : i32
    return %arg0, %c0_i32, %c0_i32_0 : i32, i32, i32
  }
  func.func @transform_6(%arg0: i32) -> (i32, i32) {
    %c0_i32 = arith.constant 0 : i32
    %c0_i32_0 = arith.constant 0 : i32
    %c0_i32_1 = arith.constant 0 : i32
    return %c0_i32, %c0_i32_0 : i32, i32
  }
  func.func @transform_7(%arg0: i32) -> (i32, i32) {
    %c0_i32 = arith.constant 0 : i32
    %c0_i32_0 = arith.constant 0 : i32
    %c0_i32_1 = arith.constant 0 : i32
    return %c0_i32, %c0_i32_0 : i32, i32
  }
  func.func @transform_8(%arg0: i32) -> (i32, i32) {
    %c0_i32 = arith.constant 0 : i32
    %c0_i32_0 = arith.constant 0 : i32
    %c0_i32_1 = arith.constant 0 : i32
    return %c0_i32, %c0_i32_0 : i32, i32
  }
  func.func @transform_9(%arg0: i32) -> (i32, i32) {
    %c0_i32 = arith.constant 0 : i32
    %c0_i32_0 = arith.constant 0 : i32
    %c0_i32_1 = arith.constant 0 : i32
    return %c0_i32, %c0_i32_0 : i32, i32
  }
  func.func @transform_10(%arg0: i32) -> (i32, i32) {
    %c0_i32 = arith.constant 0 : i32
    %c0_i32_0 = arith.constant 0 : i32
    %c0_i32_1 = arith.constant 0 : i32
    return %c0_i32, %c0_i32_0 : i32, i32
  }
  func.func @transform_11(%arg0: i32) -> (i32, i32) {
    %c0_i32 = arith.constant 0 : i32
    %c0_i32_0 = arith.constant 0 : i32
    %c0_i32_1 = arith.constant 0 : i32
    return %c0_i32, %c0_i32_0 : i32, i32
  }
  func.func @transform_12(%arg0: i32) -> (i32, i32) {
    %c0_i32 = arith.constant 0 : i32
    %c0_i32_0 = arith.constant 0 : i32
    %c0_i32_1 = arith.constant 0 : i32
    return %c0_i32, %c0_i32_0 : i32, i32
  }
  func.func @transform_13(%arg0: i32) -> (i32, i32) {
    %c0_i32 = arith.constant 0 : i32
    %c0_i32_0 = arith.constant 0 : i32
    %c0_i32_1 = arith.constant 0 : i32
    return %c0_i32, %c0_i32_0 : i32, i32
  }
  func.func @transform_14(%arg0: i32) -> (i32, i32) {
    %c0_i32 = arith.constant 0 : i32
    %c0_i32_0 = arith.constant 0 : i32
    %c0_i32_1 = arith.constant 0 : i32
    return %c0_i32, %c0_i32_0 : i32, i32
  }
  func.func @transform_15(%arg0: i32) -> (i32, i32) {
    %c0_i32 = arith.constant 0 : i32
    %c0_i32_0 = arith.constant 0 : i32
    %c0_i32_1 = arith.constant 0 : i32
    return %c0_i32, %c0_i32_0 : i32, i32
  }
  func.func @transform_16(%arg0: i32) -> (i32, i32) {
    %c0_i32 = arith.constant 0 : i32
    %c0_i32_0 = arith.constant 0 : i32
    %c0_i32_1 = arith.constant 0 : i32
    return %c0_i32, %c0_i32_0 : i32, i32
  }
  func.func @transform_17(%arg0: i32) -> (i32, i32) {
    %c0_i32 = arith.constant 0 : i32
    %c0_i32_0 = arith.constant 0 : i32
    %c0_i32_1 = arith.constant 0 : i32
    return %c0_i32, %c0_i32_0 : i32, i32
  }
  func.func @transform_18(%arg0: i32) -> (i32, i32) {
    %c0_i32 = arith.constant 0 : i32
    %c0_i32_0 = arith.constant 0 : i32
    %c0_i32_1 = arith.constant 0 : i32
    return %c0_i32, %c0_i32_0 : i32, i32
  }
  func.func @transform_19(%arg0: i32) -> (i32, i32) {
    %c0_i32 = arith.constant 0 : i32
    %c0_i32_0 = arith.constant 0 : i32
    %c0_i32_1 = arith.constant 0 : i32
    return %c0_i32, %c0_i32_0 : i32, i32
  }
  func.func @transform_20(%arg0: i32) -> (i32, i32) {
    %c0_i32 = arith.constant 0 : i32
    %c0_i32_0 = arith.constant 0 : i32
    %c0_i32_1 = arith.constant 0 : i32
    return %c0_i32, %c0_i32_0 : i32, i32
  }
  func.func @transform_21(%arg0: i32) -> (i32, i32) {
    %c0_i32 = arith.constant 0 : i32
    %c0_i32_0 = arith.constant 0 : i32
    %c0_i32_1 = arith.constant 0 : i32
    return %c0_i32, %c0_i32_0 : i32, i32
  }
  func.func @transform_22(%arg0: i32) -> (i32, i32, i32) {
    %c0_i32 = arith.constant 0 : i32
    %c0_i32_0 = arith.constant 0 : i32
    %c0_i32_1 = arith.constant 0 : i32
    return %arg0, %c0_i32, %c0_i32_0 : i32, i32, i32
  }
}

</mosaic_0001>

<llo_original>
// kernel: tpu_custom_call.1
$region0: #{tpu_custom_call.1}
  #allocation0 [shape = 'u32[]', space=smem, size = 0x4, offset = 0x4, fixed_abs, tag = 'smem constant byte address 0x4 - core index']
  #allocation1 [shape = 'u32[144,128]{1,0:T(1,128)}', space=vmem, size = 0x12000, scoped, tag = 'internal scratch']
  %s0 = inlined_call_operand.hbm [shape: f32[2,1,32], index: 0, kind: input, shape index: {}]
  %s1 = inlined_call_operand.hbm [shape: bf16[2,8,32], index: 1, kind: input, shape index: {}]
  %s2 = inlined_call_operand.hbm [shape: f32[2,1,32], index: 2, kind: input, shape index: {}]
  %s3 = inlined_call_operand.hbm [shape: bf16[2,8,32], index: 3, kind: input, shape index: {}]
  %s4 = inlined_call_operand.hbm [shape: f32[2,8,64], index: 4, kind: input, shape index: {}]
  %s5 = inlined_call_operand.vmem [shape: s32[2,8,1], index: 5, kind: input, shape index: {}]
  %s6 = inlined_call_operand.vmem [shape: f32[32,128], index: 6, kind: input, shape index: {}]
  %s7 = inlined_call_operand.hbm [shape: f32[1,128], index: 7, kind: input, shape index: {}]
  %s8 = inlined_call_operand.vmem [shape: bf16[32,64], index: 8, kind: input, shape index: {}]
  %s9 = inlined_call_operand.vmem [shape: bf16[32,1], index: 9, kind: input, shape index: {}]
  %s10 = inlined_call_operand.vmem [shape: f32[64,96], index: 10, kind: input, shape index: {}]
  %s11 = inlined_call_operand.hbm [shape: f32[1,96], index: 11, kind: input, shape index: {}]
  %s12 = inlined_call_operand.hbm [shape: f32[1,32], index: 12, kind: input, shape index: {}]
  %s13 = inlined_call_operand.hbm [shape: f32[1,32], index: 13, kind: input, shape index: {}]
  %s14 = inlined_call_operand.vmem [shape: f32[32,128], index: 14, kind: input, shape index: {}]
  %s15 = inlined_call_operand.hbm [shape: f32[1,128], index: 15, kind: input, shape index: {}]
  %s16 = inlined_call_operand.vmem [shape: bf16[32,32], index: 16, kind: input, shape index: {}]
  %s17 = inlined_call_operand.vmem [shape: bf16[32,1], index: 17, kind: input, shape index: {}]
  %s18 = inlined_call_operand.vmem [shape: bf16[32,1], index: 18, kind: input, shape index: {}]
  %s19 = inlined_call_operand.vmem [shape: f32[1,2], index: 19, kind: input, shape index: {}]
  %s20 = inlined_call_operand.vmem [shape: f32[64,32], index: 20, kind: input, shape index: {}]
  %s21 = inlined_call_operand.vmem [shape: f32[1,32], index: 21, kind: input, shape index: {}]
  %s22 = inlined_call_operand.hbm [shape: f32[2,1,160], index: 22, kind: output, shape index: {}]
  %s23 = sld [smem:[#allocation0]]
  $region161: #{tpu_custom_call.1} parent=0
    _
  %s25 = ssub.s32 1, %s23
  %s26 = scalar_select 0, %s25, %s23
  $region1: #{tpu_custom_call.1} parent=0
    #allocation2 [shape = 'u8[1024]{0}', space=vmem, size = 0x400, scoped, tag = 'input window, operand 0']
    #allocation3 [shape = 's32[2]{0}', space=sflag, size = 0x8, scoped, tag = 'scoped memory for tpu_custom_call.1']
    #allocation4 [shape = 's32[2]{0}', space=sflag, size = 0x8, scoped, tag = 'scoped memory for tpu_custom_call.1']
    #allocation5 [shape = 'u8[4096]{0}', space=vmem, size = 0x1000, scoped, tag = 'input window, operand 1']
    #allocation6 [shape = 's32[2]{0}', space=sflag, size = 0x8, scoped, tag = 'scoped memory for tpu_custom_call.1']
    #allocation7 [shape = 'u8[1024]{0}', space=vmem, size = 0x400, scoped, tag = 'input window, operand 2']
    #allocation8 [shape = 'u8[4096]{0}', space=vmem, size = 0x1000, scoped, tag = 'input window, operand 3']
    #allocation9 [shape = 's32[2]{0}', space=sflag, size = 0x8, scoped, tag = 'scoped memory for tpu_custom_call.1']
    #allocation10 [shape = 'u8[8192]{0}', space=vmem, size = 0x2000, scoped, tag = 'input window, operand 4']
    #allocation11 [shape = 'u8[512]{0}', space=vmem, size = 0x400, scoped, tag = 'input window, operand 7, single buffered']
    #allocation12 [shape = 's32[1]{0}', space=sflag, size = 0x4, scoped, tag = 'scoped memory for tpu_custom_call.1']
    #allocation13 [shape = 'u8[512]{0}', space=vmem, size = 0x400, scoped, tag = 'input window, operand 11, single buffered']
    #allocation14 [shape = 'u8[512]{0}', space=vmem, size = 0x400, scoped, tag = 'input window, operand 12, single buffered']
    #allocation15 [shape = 's32[1]{0}', space=sflag, size = 0x4, scoped, tag = 'scoped memory for tpu_custom_call.1']
    #allocation16 [shape = 'u8[512]{0}', space=vmem, size = 0x400, scoped, tag = 'input window, operand 13, single buffered']
    #allocation17 [shape = 'u8[512]{0}', space=vmem, size = 0x400, scoped, tag = 'input window, operand 15, single buffered']
    #allocation18 [shape = 's32[1]{0}', space=sflag, size = 0x4, scoped, tag = 'scoped memory for tpu_custom_call.1']
    #allocation19 [shape = 'u8[2048]{0}', space=vmem, size = 0x800, scoped, tag = 'output window, operand 0']
    %27 = vsyncpa [#allocation3], 0
    %s28 = scalar_lea.sflag [#allocation3], 1
    %29 = vsyncpa %s28, 0
    %30 = vsyncpa [#allocation6], 0
    %s31 = scalar_lea.sflag [#allocation6], 1
    %32 = vsyncpa %s31, 0
    %33 = vsyncpa [#allocation9], 0
    %s34 = scalar_lea.sflag [#allocation9], 1
    %35 = vsyncpa %s34, 0
    %36 = vsyncpa [#allocation12], 0
    %37 = vsyncpa [#allocation15], 0
    %38 = vsyncpa [#allocation18], 0
    %39 = vsyncpa [#allocation4], 0
    %s40 = scalar_lea.sflag [#allocation4], 1
    %41 = vsyncpa %s40, 0
    loop: start=0, step=1, limit=4
    $region2: #{tpu_custom_call.1} parent=1 // loop_pre_header
      _
    $region3: #{tpu_custom_call.1} parent=1 // loop_header
      %s43 = sphi 0, %s47
      %p44 = scmp.ge.s32.totalorder %s43, 4
      %s53 = sphi 0, %s55
      %s56 = sphi 0, %s53
      %s57 = sphi 0, %s56
      %s73 = sphi 0, %s57
      %s79 = sphi 0, %s81
      %s82 = sphi 0, %s79
      %s83 = sphi 0, %s82
      %s99 = sphi 0, %s83
      %s105 = sphi 0, %s107
      %s108 = sphi 0, %s105
      %s109 = sphi 0, %s108
      %s125 = sphi 0, %s109
      %s131 = sphi 0, %s133
      %s134 = sphi 0, %s131
      %s135 = sphi 0, %s134
      %s151 = sphi 0, %s135
      %s157 = sphi 0, %s159
      %s160 = sphi 0, %s157
      %s161 = sphi 0, %s160
      %s177 = sphi 0, %s161
      %s183 = sphi 0, %s185
      %s186 = sphi 0, %s183
      %s187 = sphi 0, %s186
      %s203 = sphi 0, %s187
      %s207 = sphi 0, %s207
      %s209 = sphi 0, %s207
      %s210 = sphi 0, %s209
      %s224 = sphi 0, %s210
      %s228 = sphi 0, %s228
      %s230 = sphi 0, %s228
      %s231 = sphi 0, %s230
      %s245 = sphi 0, %s231
      %s249 = sphi 0, %s249
      %s251 = sphi 0, %s249
      %s252 = sphi 0, %s251
      %s266 = sphi 0, %s252
      %s270 = sphi 0, %s270
      %s272 = sphi 0, %s270
      %s273 = sphi 0, %s272
      %s287 = sphi 0, %s273
      %s291 = sphi 0, %s291
      %s293 = sphi 0, %s291
      %s294 = sphi 0, %s293
      %s308 = sphi 0, %s294
      %s312 = sphi 0, %s312
      %s314 = sphi 0, %s312
      %s315 = sphi 0, %s314
      %s329 = sphi 0, %s315
      %s333 = sphi 0, %s333
      %s335 = sphi 0, %s333
      %s336 = sphi 0, %s335
      %s350 = sphi 0, %s336
      %s354 = sphi 0, %s354
      %s356 = sphi 0, %s354
      %s357 = sphi 0, %s356
      %s371 = sphi 0, %s357
      %s375 = sphi 0, %s375
      %s377 = sphi 0, %s375
      %s378 = sphi 0, %s377
      %s392 = sphi 0, %s378
      %s396 = sphi 0, %s396
      %s398 = sphi 0, %s396
      %s399 = sphi 0, %s398
      %s413 = sphi 0, %s399
      %s417 = sphi 0, %s417
      %s419 = sphi 0, %s417
      %s420 = sphi 0, %s419
      %s434 = sphi 0, %s420
      %s438 = sphi 0, %s438
      %s440 = sphi 0, %s438
      %s441 = sphi 0, %s440
      %s455 = sphi 0, %s441
      %s459 = sphi 0, %s459
      %s461 = sphi 0, %s459
      %s462 = sphi 0, %s461
      %s476 = sphi 0, %s462
      %s480 = sphi 0, %s480
      %s482 = sphi 0, %s480
      %s483 = sphi 0, %s482
      %s497 = sphi 0, %s483
      %s501 = sphi 0, %s501
      %s503 = sphi 0, %s501
      %s504 = sphi 0, %s503
      %s518 = sphi 0, %s504
      %s522 = sphi 0, %s522
      %s524 = sphi 0, %s522
      %s525 = sphi 0, %s524
      %s539 = sphi 0, %s525
      %s545 = sphi 0, %s547
      %s548 = sphi 0, %s545
      %s549 = sphi 0, %s548
      %s565 = sphi 0, %s549
    $region4: #{tpu_custom_call.1} parent=1 // loop_header_branch
      %46 = sbr.rel (%p44) target = $region8
    $region5: #{tpu_custom_call.1} parent=1 // loop_body
      %s48 = ssub.s32 %s43, 1
      %s49 = ssub.s32 %s43, 2
      %s50 = sadd.s32 %s43, 1
      %s51 = ssub.s32 %s43, %s50
      %p52 = scmp.eq.s32.totalorder %s51, 0
      %s54 = sadd.s32 %s53, 1
      %s55 = scalar_select %p52, %s53, %s54
      %p58 = pneg %p52
      %p59 = scmp.eq.s32.totalorder %s43, 1
      %p60 = por %p58, %p59
      %p61 = scmp.ne.s32.totalorder %s53, %s56
      %p62 = scmp.eq.s32.totalorder %s43, 0
      %p63 = por %p61, %p62
      %p64 = scmp.ne.s32.totalorder %s53, %s56
      %p65 = scmp.eq.s32.totalorder %s48, 1
      %p66 = por %p64, %p65
      %p67 = scmp.ne.s32.totalorder %s56, %s57
      %p68 = scmp.eq.s32.totalorder %s48, 0
      %p69 = por %p67, %p68
      %p70 = scmp.ne.s32.totalorder %s56, %s57
      %p71 = scmp.eq.s32.totalorder %s49, 1
      %p72 = por %p70, %p71
      %p74 = scmp.ne.s32.totalorder %s57, %s73
      %p75 = scmp.eq.s32.totalorder %s49, 0
      %p76 = por %p74, %p75
      %s77 = ssub.s32 %s43, %s50
      %p78 = scmp.eq.s32.totalorder %s77, 0
      %s80 = sadd.s32 %s79, 1
      %s81 = scalar_select %p78, %s79, %s80
      %p84 = pneg %p78
      %p85 = scmp.eq.s32.totalorder %s43, 1
      %p86 = por %p84, %p85
      %p87 = scmp.ne.s32.totalorder %s79, %s82
      %p88 = scmp.eq.s32.totalorder %s43, 0
      %p89 = por %p87, %p88
      %p90 = scmp.ne.s32.totalorder %s79, %s82
      %p91 = scmp.eq.s32.totalorder %s48, 1
      %p92 = por %p90, %p91
      %p93 = scmp.ne.s32.totalorder %s82, %s83
      %p94 = scmp.eq.s32.totalorder %s48, 0
      %p95 = por %p93, %p94
      %p96 = scmp.ne.s32.totalorder %s82, %s83
      %p97 = scmp.eq.s32.totalorder %s49, 1
      %p98 = por %p96, %p97
      %p100 = scmp.ne.s32.totalorder %s83, %s99
      %p101 = scmp.eq.s32.totalorder %s49, 0
      %p102 = por %p100, %p101
      %s103 = ssub.s32 %s43, %s50
      %p104 = scmp.eq.s32.totalorder %s103, 0
      %s106 = sadd.s32 %s105, 1
      %s107 = scalar_select %p104, %s105, %s106
      %p110 = pneg %p104
      %p111 = scmp.eq.s32.totalorder %s43, 1
      %p112 = por %p110, %p111
      %p113 = scmp.ne.s32.totalorder %s105, %s108
      %p114 = scmp.eq.s32.totalorder %s43, 0
      %p115 = por %p113, %p114
      %p116 = scmp.ne.s32.totalorder %s105, %s108
      %p117 = scmp.eq.s32.totalorder %s48, 1
      %p118 = por %p116, %p117
      %p119 = scmp.ne.s32.totalorder %s108, %s109
      %p120 = scmp.eq.s32.totalorder %s48, 0
      %p121 = por %p119, %p120
      %p122 = scmp.ne.s32.totalorder %s108, %s109
      %p123 = scmp.eq.s32.totalorder %s49, 1
      %p124 = por %p122, %p123
      %p126 = scmp.ne.s32.totalorder %s109, %s125
      %p127 = scmp.eq.s32.totalorder %s49, 0
      %p128 = por %p126, %p127
      %s129 = ssub.s32 %s43, %s50
      %p130 = scmp.eq.s32.totalorder %s129, 0
      %s132 = sadd.s32 %s131, 1
      %s133 = scalar_select %p130, %s131, %s132
      %p136 = pneg %p130
      %p137 = scmp.eq.s32.totalorder %s43, 1
      %p138 = por %p136, %p137
      %p139 = scmp.ne.s32.totalorder %s131, %s134
      %p140 = scmp.eq.s32.totalorder %s43, 0
      %p141 = por %p139, %p140
      %p142 = scmp.ne.s32.totalorder %s131, %s134
      %p143 = scmp.eq.s32.totalorder %s48, 1
      %p144 = por %p142, %p143
      %p145 = scmp.ne.s32.totalorder %s134, %s135
      %p146 = scmp.eq.s32.totalorder %s48, 0
      %p147 = por %p145, %p146
      %p148 = scmp.ne.s32.totalorder %s134, %s135
      %p149 = scmp.eq.s32.totalorder %s49, 1
      %p150 = por %p148, %p149
      %p152 = scmp.ne.s32.totalorder %s135, %s151
      %p153 = scmp.eq.s32.totalorder %s49, 0
      %p154 = por %p152, %p153
      %s155 = ssub.s32 %s43, %s50
      %p156 = scmp.eq.s32.totalorder %s155, 0
      %s158 = sadd.s32 %s157, 1
      %s159 = scalar_select %p156, %s157, %s158
      %p162 = pneg %p156
      %p163 = scmp.eq.s32.totalorder %s43, 1
      %p164 = por %p162, %p163
      %p165 = scmp.ne.s32.totalorder %s157, %s160
      %p166 = scmp.eq.s32.totalorder %s43, 0
      %p167 = por %p165, %p166
      %p168 = scmp.ne.s32.totalorder %s157, %s160
      %p169 = scmp.eq.s32.totalorder %s48, 1
      %p170 = por %p168, %p169
      %p171 = scmp.ne.s32.totalorder %s160, %s161
      %p172 = scmp.eq.s32.totalorder %s48, 0
      %p173 = por %p171, %p172
      %p174 = scmp.ne.s32.totalorder %s160, %s161
      %p175 = scmp.eq.s32.totalorder %s49, 1
      %p176 = por %p174, %p175
      %p178 = scmp.ne.s32.totalorder %s161, %s177
      %p179 = scmp.eq.s32.totalorder %s49, 0
      %p180 = por %p178, %p179
      %s181 = ssub.s32 %s43, %s50
      %p182 = scmp.eq.s32.totalorder %s181, 0
      %s184 = sadd.s32 %s183, 1
      %s185 = scalar_select %p182, %s183, %s184
      %p188 = pneg %p182
      %p189 = scmp.eq.s32.totalorder %s43, 1
      %p190 = por %p188, %p189
      %p191 = scmp.ne.s32.totalorder %s183, %s186
      %p192 = scmp.eq.s32.totalorder %s43, 0
      %p193 = por %p191, %p192
      %p194 = scmp.ne.s32.totalorder %s183, %s186
      %p195 = scmp.eq.s32.totalorder %s48, 1
      %p196 = por %p194, %p195
      %p197 = scmp.ne.s32.totalorder %s186, %s187
      %p198 = scmp.eq.s32.totalorder %s48, 0
      %p199 = por %p197, %p198
      %p200 = scmp.ne.s32.totalorder %s186, %s187
      %p201 = scmp.eq.s32.totalorder %s49, 1
      %p202 = por %p200, %p201
      %p204 = scmp.ne.s32.totalorder %s187, %s203
      %p205 = scmp.eq.s32.totalorder %s49, 0
      %p206 = por %p204, %p205
      %s208 = sadd.s32 %s207, 1
      %p211 = scmp.eq.s32.totalorder %s43, 1
      %p212 = scmp.ne.s32.totalorder %s207, %s209
      %p213 = scmp.eq.s32.totalorder %s43, 0
      %p214 = por %p212, %p213
      %p215 = scmp.ne.s32.totalorder %s207, %s209
      %p216 = scmp.eq.s32.totalorder %s48, 1
      %p217 = por %p215, %p216
      %p218 = scmp.ne.s32.totalorder %s209, %s210
      %p219 = scmp.eq.s32.totalorder %s48, 0
      %p220 = por %p218, %p219
      %p221 = scmp.ne.s32.totalorder %s209, %s210
      %p222 = scmp.eq.s32.totalorder %s49, 1
      %p223 = por %p221, %p222
      %p225 = scmp.ne.s32.totalorder %s210, %s224
      %p226 = scmp.eq.s32.totalorder %s49, 0
      %p227 = por %p225, %p226
      %s229 = sadd.s32 %s228, 1
      %p232 = scmp.eq.s32.totalorder %s43, 1
      %p233 = scmp.ne.s32.totalorder %s228, %s230
      %p234 = scmp.eq.s32.totalorder %s43, 0
      %p235 = por %p233, %p234
      %p236 = scmp.ne.s32.totalorder %s228, %s230
      %p237 = scmp.eq.s32.totalorder %s48, 1
      %p238 = por %p236, %p237
      %p239 = scmp.ne.s32.totalorder %s230, %s231
      %p240 = scmp.eq.s32.totalorder %s48, 0
      %p241 = por %p239, %p240
      %p242 = scmp.ne.s32.totalorder %s230, %s231
      %p243 = scmp.eq.s32.totalorder %s49, 1
      %p244 = por %p242, %p243
      %p246 = scmp.ne.s32.totalorder %s231, %s245
      %p247 = scmp.eq.s32.totalorder %s49, 0
      %p248 = por %p246, %p247
      %s250 = sadd.s32 %s249, 1
      %p253 = scmp.eq.s32.totalorder %s43, 1
      %p254 = scmp.ne.s32.totalorder %s249, %s251
      %p255 = scmp.eq.s32.totalorder %s43, 0
      %p256 = por %p254, %p255
      %p257 = scmp.ne.s32.totalorder %s249, %s251
      %p258 = scmp.eq.s32.totalorder %s48, 1
      %p259 = por %p257, %p258
      %p260 = scmp.ne.s32.totalorder %s251, %s252
      %p261 = scmp.eq.s32.totalorder %s48, 0
      %p262 = por %p260, %p261
      %p263 = scmp.ne.s32.totalorder %s251, %s252
      %p264 = scmp.eq.s32.totalorder %s49, 1
      %p265 = por %p263, %p264
      %p267 = scmp.ne.s32.totalorder %s252, %s266
      %p268 = scmp.eq.s32.totalorder %s49, 0
      %p269 = por %p267, %p268
      %s271 = sadd.s32 %s270, 1
      %p274 = scmp.eq.s32.totalorder %s43, 1
      %p275 = scmp.ne.s32.totalorder %s270, %s272
      %p276 = scmp.eq.s32.totalorder %s43, 0
      %p277 = por %p275, %p276
      %p278 = scmp.ne.s32.totalorder %s270, %s272
      %p279 = scmp.eq.s32.totalorder %s48, 1
      %p280 = por %p278, %p279
      %p281 = scmp.ne.s32.totalorder %s272, %s273
      %p282 = scmp.eq.s32.totalorder %s48, 0
      %p283 = por %p281, %p282
      %p284 = scmp.ne.s32.totalorder %s272, %s273
      %p285 = scmp.eq.s32.totalorder %s49, 1
      %p286 = por %p284, %p285
      %p288 = scmp.ne.s32.totalorder %s273, %s287
      %p289 = scmp.eq.s32.totalorder %s49, 0
      %p290 = por %p288, %p289
      %s292 = sadd.s32 %s291, 1
      %p295 = scmp.eq.s32.totalorder %s43, 1
      %p296 = scmp.ne.s32.totalorder %s291, %s293
      %p297 = scmp.eq.s32.totalorder %s43, 0
      %p298 = por %p296, %p297
      %p299 = scmp.ne.s32.totalorder %s291, %s293
      %p300 = scmp.eq.s32.totalorder %s48, 1
      %p301 = por %p299, %p300
      %p302 = scmp.ne.s32.totalorder %s293, %s294
      %p303 = scmp.eq.s32.totalorder %s48, 0
      %p304 = por %p302, %p303
      %p305 = scmp.ne.s32.totalorder %s293, %s294
      %p306 = scmp.eq.s32.totalorder %s49, 1
      %p307 = por %p305, %p306
      %p309 = scmp.ne.s32.totalorder %s294, %s308
      %p310 = scmp.eq.s32.totalorder %s49, 0
      %p311 = por %p309, %p310
      %s313 = sadd.s32 %s312, 1
      %p316 = scmp.eq.s32.totalorder %s43, 1
      %p317 = scmp.ne.s32.totalorder %s312, %s314
      %p318 = scmp.eq.s32.totalorder %s43, 0
      %p319 = por %p317, %p318
      %p320 = scmp.ne.s32.totalorder %s312, %s314
      %p321 = scmp.eq.s32.totalorder %s48, 1
      %p322 = por %p320, %p321
      %p323 = scmp.ne.s32.totalorder %s314, %s315
      %p324 = scmp.eq.s32.totalorder %s48, 0
      %p325 = por %p323, %p324
      %p326 = scmp.ne.s32.totalorder %s314, %s315
      %p327 = scmp.eq.s32.totalorder %s49, 1
      %p328 = por %p326, %p327
      %p330 = scmp.ne.s32.totalorder %s315, %s329
      %p331 = scmp.eq.s32.totalorder %s49, 0
      %p332 = por %p330, %p331
      %s334 = sadd.s32 %s333, 1
      %p337 = scmp.eq.s32.totalorder %s43, 1
      %p338 = scmp.ne.s32.totalorder %s333, %s335
      %p339 = scmp.eq.s32.totalorder %s43, 0
      %p340 = por %p338, %p339
      %p341 = scmp.ne.s32.totalorder %s333, %s335
      %p342 = scmp.eq.s32.totalorder %s48, 1
      %p343 = por %p341, %p342
      %p344 = scmp.ne.s32.totalorder %s335, %s336
      %p345 = scmp.eq.s32.totalorder %s48, 0
      %p346 = por %p344, %p345
      %p347 = scmp.ne.s32.totalorder %s335, %s336
      %p348 = scmp.eq.s32.totalorder %s49, 1
      %p349 = por %p347, %p348
      %p351 = scmp.ne.s32.totalorder %s336, %s350
      %p352 = scmp.eq.s32.totalorder %s49, 0
      %p353 = por %p351, %p352
      %s355 = sadd.s32 %s354, 1
      %p358 = scmp.eq.s32.totalorder %s43, 1
      %p359 = scmp.ne.s32.totalorder %s354, %s356
      %p360 = scmp.eq.s32.totalorder %s43, 0
      %p361 = por %p359, %p360
      %p362 = scmp.ne.s32.totalorder %s354, %s356
      %p363 = scmp.eq.s32.totalorder %s48, 1
      %p364 = por %p362, %p363
      %p365 = scmp.ne.s32.totalorder %s356, %s357
      %p366 = scmp.eq.s32.totalorder %s48, 0
      %p367 = por %p365, %p366
      %p368 = scmp.ne.s32.totalorder %s356, %s357
      %p369 = scmp.eq.s32.totalorder %s49, 1
      %p370 = por %p368, %p369
      %p372 = scmp.ne.s32.totalorder %s357, %s371
      %p373 = scmp.eq.s32.totalorder %s49, 0
      %p374 = por %p372, %p373
      %s376 = sadd.s32 %s375, 1
      %p379 = scmp.eq.s32.totalorder %s43, 1
      %p380 = scmp.ne.s32.totalorder %s375, %s377
      %p381 = scmp.eq.s32.totalorder %s43, 0
      %p382 = por %p380, %p381
      %p383 = scmp.ne.s32.totalorder %s375, %s377
      %p384 = scmp.eq.s32.totalorder %s48, 1
      %p385 = por %p383, %p384
      %p386 = scmp.ne.s32.totalorder %s377, %s378
      %p387 = scmp.eq.s32.totalorder %s48, 0
      %p388 = por %p386, %p387
      %p389 = scmp.ne.s32.totalorder %s377, %s378
      %p390 = scmp.eq.s32.totalorder %s49, 1
      %p391 = por %p389, %p390
      %p393 = scmp.ne.s32.totalorder %s378, %s392
      %p394 = scmp.eq.s32.totalorder %s49, 0
      %p395 = por %p393, %p394
      %s397 = sadd.s32 %s396, 1
      %p400 = scmp.eq.s32.totalorder %s43, 1
      %p401 = scmp.ne.s32.totalorder %s396, %s398
      %p402 = scmp.eq.s32.totalorder %s43, 0
      %p403 = por %p401, %p402
      %p404 = scmp.ne.s32.totalorder %s396, %s398
      %p405 = scmp.eq.s32.totalorder %s48, 1
      %p406 = por %p404, %p405
      %p407 = scmp.ne.s32.totalorder %s398, %s399
      %p408 = scmp.eq.s32.totalorder %s48, 0
      %p409 = por %p407, %p408
      %p410 = scmp.ne.s32.totalorder %s398, %s399
      %p411 = scmp.eq.s32.totalorder %s49, 1
      %p412 = por %p410, %p411
      %p414 = scmp.ne.s32.totalorder %s399, %s413
      %p415 = scmp.eq.s32.totalorder %s49, 0
      %p416 = por %p414, %p415
      %s418 = sadd.s32 %s417, 1
      %p421 = scmp.eq.s32.totalorder %s43, 1
      %p422 = scmp.ne.s32.totalorder %s417, %s419
      %p423 = scmp.eq.s32.totalorder %s43, 0
      %p424 = por %p422, %p423
      %p425 = scmp.ne.s32.totalorder %s417, %s419
      %p426 = scmp.eq.s32.totalorder %s48, 1
      %p427 = por %p425, %p426
      %p428 = scmp.ne.s32.totalorder %s419, %s420
      %p429 = scmp.eq.s32.totalorder %s48, 0
      %p430 = por %p428, %p429
      %p431 = scmp.ne.s32.totalorder %s419, %s420
      %p432 = scmp.eq.s32.totalorder %s49, 1
      %p433 = por %p431, %p432
      %p435 = scmp.ne.s32.totalorder %s420, %s434
      %p436 = scmp.eq.s32.totalorder %s49, 0
      %p437 = por %p435, %p436
      %s439 = sadd.s32 %s438, 1
      %p442 = scmp.eq.s32.totalorder %s43, 1
      %p443 = scmp.ne.s32.totalorder %s438, %s440
      %p444 = scmp.eq.s32.totalorder %s43, 0
      %p445 = por %p443, %p444
      %p446 = scmp.ne.s32.totalorder %s438, %s440
      %p447 = scmp.eq.s32.totalorder %s48, 1
      %p448 = por %p446, %p447
      %p449 = scmp.ne.s32.totalorder %s440, %s441
      %p450 = scmp.eq.s32.totalorder %s48, 0
      %p451 = por %p449, %p450
      %p452 = scmp.ne.s32.totalorder %s440, %s441
      %p453 = scmp.eq.s32.totalorder %s49, 1
      %p454 = por %p452, %p453
      %p456 = scmp.ne.s32.totalorder %s441, %s455
      %p457 = scmp.eq.s32.totalorder %s49, 0
      %p458 = por %p456, %p457
      %s460 = sadd.s32 %s459, 1
      %p463 = scmp.eq.s32.totalorder %s43, 1
      %p464 = scmp.ne.s32.totalorder %s459, %s461
      %p465 = scmp.eq.s32.totalorder %s43, 0
      %p466 = por %p464, %p465
      %p467 = scmp.ne.s32.totalorder %s459, %s461
      %p468 = scmp.eq.s32.totalorder %s48, 1
      %p469 = por %p467, %p468
      %p470 = scmp.ne.s32.totalorder %s461, %s462
      %p471 = scmp.eq.s32.totalorder %s48, 0
      %p472 = por %p470, %p471
      %p473 = scmp.ne.s32.totalorder %s461, %s462
      %p474 = scmp.eq.s32.totalorder %s49, 1
      %p475 = por %p473, %p474
      %p477 = scmp.ne.s32.totalorder %s462, %s476
      %p478 = scmp.eq.s32.totalorder %s49, 0
      %p479 = por %p477, %p478
      %s481 = sadd.s32 %s480, 1
      %p484 = scmp.eq.s32.totalorder %s43, 1
      %p485 = scmp.ne.s32.totalorder %s480, %s482
      %p486 = scmp.eq.s32.totalorder %s43, 0
      %p487 = por %p485, %p486
      %p488 = scmp.ne.s32.totalorder %s480, %s482
      %p489 = scmp.eq.s32.totalorder %s48, 1
      %p490 = por %p488, %p489
      %p491 = scmp.ne.s32.totalorder %s482, %s483
      %p492 = scmp.eq.s32.totalorder %s48, 0
      %p493 = por %p491, %p492
      %p494 = scmp.ne.s32.totalorder %s482, %s483
      %p495 = scmp.eq.s32.totalorder %s49, 1
      %p496 = por %p494, %p495
      %p498 = scmp.ne.s32.totalorder %s483, %s497
      %p499 = scmp.eq.s32.totalorder %s49, 0
      %p500 = por %p498, %p499
      %s502 = sadd.s32 %s501, 1
      %p505 = scmp.eq.s32.totalorder %s43, 1
      %p506 = scmp.ne.s32.totalorder %s501, %s503
      %p507 = scmp.eq.s32.totalorder %s43, 0
      %p508 = por %p506, %p507
      %p509 = scmp.ne.s32.totalorder %s501, %s503
      %p510 = scmp.eq.s32.totalorder %s48, 1
      %p511 = por %p509, %p510
      %p512 = scmp.ne.s32.totalorder %s503, %s504
      %p513 = scmp.eq.s32.totalorder %s48, 0
      %p514 = por %p512, %p513
      %p515 = scmp.ne.s32.totalorder %s503, %s504
      %p516 = scmp.eq.s32.totalorder %s49, 1
      %p517 = por %p515, %p516
      %p519 = scmp.ne.s32.totalorder %s504, %s518
      %p520 = scmp.eq.s32.totalorder %s49, 0
      %p521 = por %p519, %p520
      %s523 = sadd.s32 %s522, 1
      %p526 = scmp.eq.s32.totalorder %s43, 1
      %p527 = scmp.ne.s32.totalorder %s522, %s524
      %p528 = scmp.eq.s32.totalorder %s43, 0
      %p529 = por %p527, %p528
      %p530 = scmp.ne.s32.totalorder %s522, %s524
      %p531 = scmp.eq.s32.totalorder %s48, 1
      %p532 = por %p530, %p531
      %p533 = scmp.ne.s32.totalorder %s524, %s525
      %p534 = scmp.eq.s32.totalorder %s48, 0
      %p535 = por %p533, %p534
      %p536 = scmp.ne.s32.totalorder %s524, %s525
      %p537 = scmp.eq.s32.totalorder %s49, 1
      %p538 = por %p536, %p537
      %p540 = scmp.ne.s32.totalorder %s525, %s539
      %p541 = scmp.eq.s32.totalorder %s49, 0
      %p542 = por %p540, %p541
      %s543 = ssub.s32 %s43, %s50
      %p544 = scmp.eq.s32.totalorder %s543, 0
      %s546 = sadd.s32 %s545, 1
      %s547 = scalar_select %p544, %s545, %s546
      %p550 = pneg %p544
      %p551 = scmp.eq.s32.totalorder %s43, 1
      %p552 = por %p550, %p551
      %p553 = scmp.ne.s32.totalorder %s545, %s548
      %p554 = scmp.eq.s32.totalorder %s43, 0
      %p555 = por %p553, %p554
      %p556 = scmp.ne.s32.totalorder %s545, %s548
      %p557 = scmp.eq.s32.totalorder %s48, 1
      %p558 = por %p556, %p557
      %p559 = scmp.ne.s32.totalorder %s548, %s549
      %p560 = scmp.eq.s32.totalorder %s48, 0
      %p561 = por %p559, %p560
      %p562 = scmp.ne.s32.totalorder %s548, %s549
      %p563 = scmp.eq.s32.totalorder %s49, 1
      %p564 = por %p562, %p563
      %p566 = scmp.ne.s32.totalorder %s549, %s565
      %p567 = scmp.eq.s32.totalorder %s49, 0
      %p568 = por %p566, %p567
      %p569 = scmp.le.s32.totalorder 1, %s43
      %p570 = scmp.lt.s32.totalorder %s43, 3
      %p571 = pnand %p569, %p570
      %p572 = pneg %p571
      // Predicated region
      $region9: #{tpu_custom_call.1} parent=5 // pred_check
        _
      $region10: #{tpu_custom_call.1} parent=5 // pred_check_branch
        %574 = sbr.rel (%p571) target = $region12
      $region11: #{tpu_custom_call.1} parent=5 // pred_region
        %s575 = ssub.s32 %s43, 1
        // Predicated region
        $region13: #{tpu_custom_call.1} parent=11 // pred_check
          %p576 = pneg %p220
        $region14: #{tpu_custom_call.1} parent=11 // pred_check_branch
          %578 = sbr.rel (%p576) target = $region16
        $region15: #{tpu_custom_call.1} parent=11 // pred_region
          _
        $region16: #{tpu_custom_call.1} parent=11 // pred_fallthru
          _
        // Predicated region
        $region17: #{tpu_custom_call.1} parent=11 // pred_check
          %p579 = pneg %p241
        $region18: #{tpu_custom_call.1} parent=11 // pred_check_branch
          %581 = sbr.rel (%p579) target = $region20
        $region19: #{tpu_custom_call.1} parent=11 // pred_region
          %s583 = ssub.s32 16, 16
          %584 = vsyncadd [#allocation12], %s583
          %s586 = sshll.u32 [#allocation11], 4
          %s587 = int_to_ptr.vmem [resolvable:$true] %s586
          %589 = dma.hbm_to_vmem [thread:$0]  %s7, 16, %s587, [#allocation12]
        $region20: #{tpu_custom_call.1} parent=11 // pred_fallthru
          _
        // Predicated region
        $region21: #{tpu_custom_call.1} parent=11 // pred_check
          %p590 = pneg %p262
        $region22: #{tpu_custom_call.1} parent=11 // pred_check_branch
          %592 = sbr.rel (%p590) target = $region24
        $region23: #{tpu_custom_call.1} parent=11 // pred_region
          _
        $region24: #{tpu_custom_call.1} parent=11 // pred_fallthru
          _
        // Predicated region
        $region25: #{tpu_custom_call.1} parent=11 // pred_check
          %p593 = pneg %p283
        $region26: #{tpu_custom_call.1} parent=11 // pred_check_branch
          %595 = sbr.rel (%p593) target = $region28
        $region27: #{tpu_custom_call.1} parent=11 // pred_region
          _
        $region28: #{tpu_custom_call.1} parent=11 // pred_fallthru
          _
        // Predicated region
        $region29: #{tpu_custom_call.1} parent=11 // pred_check
          %p596 = pneg %p304
        $region30: #{tpu_custom_call.1} parent=11 // pred_check_branch
          %598 = sbr.rel (%p596) target = $region32
        $region31: #{tpu_custom_call.1} parent=11 // pred_region
          _
        $region32: #{tpu_custom_call.1} parent=11 // pred_fallthru
          _
        // Predicated region
        $region33: #{tpu_custom_call.1} parent=11 // pred_check
          %p599 = pneg %p325
        $region34: #{tpu_custom_call.1} parent=11 // pred_check_branch
          %601 = sbr.rel (%p599) target = $region36
        $region35: #{tpu_custom_call.1} parent=11 // pred_region
          %s603 = ssub.s32 16, 16
          %604 = vsyncadd [#allocation12], %s603
          %s606 = sshll.u32 [#allocation13], 4
          %s607 = int_to_ptr.vmem [resolvable:$true] %s606
          %609 = dma.hbm_to_vmem [thread:$0]  %s11, 16, %s607, [#allocation12]
        $region36: #{tpu_custom_call.1} parent=11 // pred_fallthru
          _
        // Predicated region
        $region37: #{tpu_custom_call.1} parent=11 // pred_check
          %p610 = pneg %p346
        $region38: #{tpu_custom_call.1} parent=11 // pred_check_branch
          %612 = sbr.rel (%p610) target = $region40
        $region39: #{tpu_custom_call.1} parent=11 // pred_region
          %s614 = ssub.s32 16, 16
          %615 = vsyncadd [#allocation15], %s614
          %s617 = sshll.u32 [#allocation14], 4
          %s618 = int_to_ptr.vmem [resolvable:$true] %s617
          %620 = dma.hbm_to_vmem [thread:$0]  %s12, 16, %s618, [#allocation15]
        $region40: #{tpu_custom_call.1} parent=11 // pred_fallthru
          _
        // Predicated region
        $region41: #{tpu_custom_call.1} parent=11 // pred_check
          %p621 = pneg %p367
        $region42: #{tpu_custom_call.1} parent=11 // pred_check_branch
          %623 = sbr.rel (%p621) target = $region44
        $region43: #{tpu_custom_call.1} parent=11 // pred_region
          %s625 = ssub.s32 16, 16
          %626 = vsyncadd [#allocation15], %s625
          %s628 = sshll.u32 [#allocation16], 4
          %s629 = int_to_ptr.vmem [resolvable:$true] %s628
          %631 = dma.hbm_to_vmem [thread:$0]  %s13, 16, %s629, [#allocation15]
        $region44: #{tpu_custom_call.1} parent=11 // pred_fallthru
          _
        // Predicated region
        $region45: #{tpu_custom_call.1} parent=11 // pred_check
          %p632 = pneg %p388
        $region46: #{tpu_custom_call.1} parent=11 // pred_check_branch
          %634 = sbr.rel (%p632) target = $region48
        $region47: #{tpu_custom_call.1} parent=11 // pred_region
          _
        $region48: #{tpu_custom_call.1} parent=11 // pred_fallthru
          _
        // Predicated region
        $region49: #{tpu_custom_call.1} parent=11 // pred_check
          %p635 = pneg %p409
        $region50: #{tpu_custom_call.1} parent=11 // pred_check_branch
          %637 = sbr.rel (%p635) target = $region52
        $region51: #{tpu_custom_call.1} parent=11 // pred_region
          %s639 = ssub.s32 16, 16
          %640 = vsyncadd [#allocation18], %s639
          %s642 = sshll.u32 [#allocation17], 4
          %s643 = int_to_ptr.vmem [resolvable:$true] %s642
          %645 = dma.hbm_to_vmem [thread:$0]  %s15, 16, %s643, [#allocation18]
        $region52: #{tpu_custom_call.1} parent=11 // pred_fallthru
          _
        // Predicated region
        $region53: #{tpu_custom_call.1} parent=11 // pred_check
          %p646 = pneg %p430
        $region54: #{tpu_custom_call.1} parent=11 // pred_check_branch
          %648 = sbr.rel (%p646) target = $region56
        $region55: #{tpu_custom_call.1} parent=11 // pred_region
          _
        $region56: #{tpu_custom_call.1} parent=11 // pred_fallthru
          _
        // Predicated region
        $region57: #{tpu_custom_call.1} parent=11 // pred_check
          %p649 = pneg %p451
        $region58: #{tpu_custom_call.1} parent=11 // pred_check_branch
          %651 = sbr.rel (%p649) target = $region60
        $region59: #{tpu_custom_call.1} parent=11 // pred_region
          _
        $region60: #{tpu_custom_call.1} parent=11 // pred_fallthru
          _
        // Predicated region
        $region61: #{tpu_custom_call.1} parent=11 // pred_check
          %p652 = pneg %p472
        $region62: #{tpu_custom_call.1} parent=11 // pred_check_branch
          %654 = sbr.rel (%p652) target = $region64
        $region63: #{tpu_custom_call.1} parent=11 // pred_region
          _
        $region64: #{tpu_custom_call.1} parent=11 // pred_fallthru
          _
        // Predicated region
        $region65: #{tpu_custom_call.1} parent=11 // pred_check
          %p655 = pneg %p493
        $region66: #{tpu_custom_call.1} parent=11 // pred_check_branch
          %657 = sbr.rel (%p655) target = $region68
        $region67: #{tpu_custom_call.1} parent=11 // pred_region
          _
        $region68: #{tpu_custom_call.1} parent=11 // pred_fallthru
          _
        // Predicated region
        $region69: #{tpu_custom_call.1} parent=11 // pred_check
          %p658 = pneg %p514
        $region70: #{tpu_custom_call.1} parent=11 // pred_check_branch
          %660 = sbr.rel (%p658) target = $region72
        $region71: #{tpu_custom_call.1} parent=11 // pred_region
          _
        $region72: #{tpu_custom_call.1} parent=11 // pred_fallthru
          _
        // Predicated region
        $region73: #{tpu_custom_call.1} parent=11 // pred_check
          %p661 = pneg %p535
        $region74: #{tpu_custom_call.1} parent=11 // pred_check_branch
          %663 = sbr.rel (%p661) target = $region76
        $region75: #{tpu_custom_call.1} parent=11 // pred_region
          _
        $region76: #{tpu_custom_call.1} parent=11 // pred_fallthru
          _
      $region12: #{tpu_custom_call.1} parent=5 // pred_fallthru
        _
      %p664 = scmp.lt.s32.totalorder %s43, 2
      // Predicated region
      $region77: #{tpu_custom_call.1} parent=5 // pred_check
        %p665 = pneg %p664
      $region78: #{tpu_custom_call.1} parent=5 // pred_check_branch
        %667 = sbr.rel (%p665) target = $region80
      $region79: #{tpu_custom_call.1} parent=5 // pred_region
        // Predicated region
        $region81: #{tpu_custom_call.1} parent=79 // pred_check
          %p668 = pneg %p63
        $region82: #{tpu_custom_call.1} parent=79 // pred_check_branch
          %670 = sbr.rel (%p668) target = $region84
        $region83: #{tpu_custom_call.1} parent=79 // pred_region
          %s671 = sand.u32 %s53, 1
          %s672 = scalar_lea.sflag [#allocation3], %s671
          %s673 = sand.u32 %s53, 1
          %s674 = scalar_lea.vmem [#allocation2], %s673
          %s676 = ssub.s32 16, 16
          %677 = vsyncadd %s672, %s676
          %s678 = smul.addr %s43, 16
          %s679 = scalar_lea.hbm %s0, %s678
          %s681 = sshll.u32 %s674, 4
          %s682 = int_to_ptr.vmem [resolvable:$true] %s681
          %684 = dma.hbm_to_vmem [thread:$0]  %s679, 16, %s682, %s672
        $region84: #{tpu_custom_call.1} parent=79 // pred_fallthru
          _
        // Predicated region
        $region85: #{tpu_custom_call.1} parent=79 // pred_check
          %p685 = pneg %p89
        $region86: #{tpu_custom_call.1} parent=79 // pred_check_branch
          %687 = sbr.rel (%p685) target = $region88
        $region87: #{tpu_custom_call.1} parent=79 // pred_region
          %s688 = sand.u32 %s43, 1
          %s689 = scalar_lea.sflag [#allocation6], %s688
          %s690 = sand.u32 %s79, 1
          %s691 = smul.addr %s690, 4
          %s692 = scalar_lea.vmem [#allocation5], %s691
          %s694 = ssub.s32 64, 64
          %695 = vsyncadd %s689, %s694
          %s696 = smul.addr %s43, 64
          %s697 = scalar_lea.hbm %s1, %s696
          %s699 = sshll.u32 %s692, 4
          %s700 = int_to_ptr.vmem [resolvable:$true] %s699
          %702 = dma.hbm_to_vmem [thread:$0]  %s697, 64, %s700, %s689
        $region88: #{tpu_custom_call.1} parent=79 // pred_fallthru
          _
        // Predicated region
        $region89: #{tpu_custom_call.1} parent=79 // pred_check
          %p703 = pneg %p115
        $region90: #{tpu_custom_call.1} parent=79 // pred_check_branch
          %705 = sbr.rel (%p703) target = $region92
        $region91: #{tpu_custom_call.1} parent=79 // pred_region
          %s706 = sand.u32 %s43, 1
          %s707 = scalar_lea.sflag [#allocation6], %s706
          %s708 = sand.u32 %s105, 1
          %s709 = scalar_lea.vmem [#allocation7], %s708
          %s711 = ssub.s32 16, 16
          %712 = vsyncadd %s707, %s711
          %s713 = smul.addr %s43, 16
          %s714 = scalar_lea.hbm %s2, %s713
          %s716 = sshll.u32 %s709, 4
          %s717 = int_to_ptr.vmem [resolvable:$true] %s716
          %719 = dma.hbm_to_vmem [thread:$0]  %s714, 16, %s717, %s707
        $region92: #{tpu_custom_call.1} parent=79 // pred_fallthru
          _
        // Predicated region
        $region93: #{tpu_custom_call.1} parent=79 // pred_check
          %p720 = pneg %p141
        $region94: #{tpu_custom_call.1} parent=79 // pred_check_branch
          %722 = sbr.rel (%p720) target = $region96
        $region95: #{tpu_custom_call.1} parent=79 // pred_region
          %s723 = sand.u32 %s43, 1
          %s724 = scalar_lea.sflag [#allocation9], %s723
          %s725 = sand.u32 %s131, 1
          %s726 = smul.addr %s725, 4
          %s727 = scalar_lea.vmem [#allocation8], %s726
          %s729 = ssub.s32 64, 64
          %730 = vsyncadd %s724, %s729
          %s731 = smul.addr %s43, 64
          %s732 = scalar_lea.hbm %s3, %s731
          %s734 = sshll.u32 %s727, 4
          %s735 = int_to_ptr.vmem [resolvable:$true] %s734
          %737 = dma.hbm_to_vmem [thread:$0]  %s732, 64, %s735, %s724
        $region96: #{tpu_custom_call.1} parent=79 // pred_fallthru
          _
        // Predicated region
        $region97: #{tpu_custom_call.1} parent=79 // pred_check
          %p738 = pneg %p167
        $region98: #{tpu_custom_call.1} parent=79 // pred_check_branch
          %740 = sbr.rel (%p738) target = $region100
        $region99: #{tpu_custom_call.1} parent=79 // pred_region
          %s741 = sand.u32 %s43, 1
          %s742 = scalar_lea.sflag [#allocation9], %s741
          %s743 = sand.u32 %s157, 1
          %s744 = smul.addr %s743, 8
          %s745 = scalar_lea.vmem [#allocation10], %s744
          %s747 = ssub.s32 128, 128
          %748 = vsyncadd %s742, %s747
          %s749 = smul.addr %s43, 128
          %s750 = scalar_lea.hbm %s4, %s749
          %s752 = sshll.u32 %s745, 4
          %s753 = int_to_ptr.vmem [resolvable:$true] %s752
          %755 = dma.hbm_to_vmem [thread:$0]  %s750, 128, %s753, %s742
        $region100: #{tpu_custom_call.1} parent=79 // pred_fallthru
          _
        // Predicated region
        $region101: #{tpu_custom_call.1} parent=79 // pred_check
          %p756 = pneg %p193
        $region102: #{tpu_custom_call.1} parent=79 // pred_check_branch
          %758 = sbr.rel (%p756) target = $region104
        $region103: #{tpu_custom_call.1} parent=79 // pred_region
          %p759 = scmp.lt.s32.totalorder %s43, 1
          %s760 = scalar_select %p759, %s43, 1
          %s761 = smul.addr %s760, 8
          %s762 = scalar_lea.vmem %s5, %s761
        $region104: #{tpu_custom_call.1} parent=79 // pred_fallthru
          _
      $region80: #{tpu_custom_call.1} parent=5 // pred_fallthru
        _
      %p763 = scmp.le.s32.totalorder 1, %s43
      %p764 = scmp.lt.s32.totalorder %s43, 3
      %p765 = pnand %p763, %p764
      %p766 = pneg %p765
      // Predicated region
      $region105: #{tpu_custom_call.1} parent=5 // pred_check
        _
      $region106: #{tpu_custom_call.1} parent=5 // pred_check_branch
        %768 = sbr.rel (%p765) target = $region108
      $region107: #{tpu_custom_call.1} parent=5 // pred_region
        %s769 = ssub.s32 %s43, 1
        %s770 = sand.u32 %s56, 1
        %s771 = scalar_lea.sflag [#allocation3], %s770
        %s772 = sand.u32 %s56, 1
        %s773 = scalar_lea.vmem [#allocation2], %s772
        // Predicated region
        $region109: #{tpu_custom_call.1} parent=107 // pred_check
          %p774 = pneg %p69
        $region110: #{tpu_custom_call.1} parent=107 // pred_check_branch
          %776 = sbr.rel (%p774) target = $region112
        $region111: #{tpu_custom_call.1} parent=107 // pred_region
          %777 = dma.done %s771, 16
        $region112: #{tpu_custom_call.1} parent=107 // pred_fallthru
          _
        %s778 = sand.u32 %s48, 1
        %s779 = scalar_lea.sflag [#allocation6], %s778
        %s780 = sand.u32 %s82, 1
        %s781 = smul.addr %s780, 4
        %s782 = scalar_lea.vmem [#allocation5], %s781
        // Predicated region
        $region113: #{tpu_custom_call.1} parent=107 // pred_check
          %p783 = pneg %p95
        $region114: #{tpu_custom_call.1} parent=107 // pred_check_branch
          %785 = sbr.rel (%p783) target = $region116
        $region115: #{tpu_custom_call.1} parent=107 // pred_region
          %786 = dma.done %s779, 64
        $region116: #{tpu_custom_call.1} parent=107 // pred_fallthru
          _
        %s787 = sand.u32 %s48, 1
        %s788 = scalar_lea.sflag [#allocation6], %s787
        %s789 = sand.u32 %s108, 1
        %s790 = scalar_lea.vmem [#allocation7], %s789
        // Predicated region
        $region117: #{tpu_custom_call.1} parent=107 // pred_check
          %p791 = pneg %p121
        $region118: #{tpu_custom_call.1} parent=107 // pred_check_branch
          %793 = sbr.rel (%p791) target = $region120
        $region119: #{tpu_custom_call.1} parent=107 // pred_region
          %794 = dma.done %s788, 16
        $region120: #{tpu_custom_call.1} parent=107 // pred_fallthru
          _
        %s795 = sand.u32 %s48, 1
        %s796 = scalar_lea.sflag [#allocation9], %s795
        %s797 = sand.u32 %s134, 1
        %s798 = smul.addr %s797, 4
        %s799 = scalar_lea.vmem [#allocation8], %s798
        // Predicated region
        $region121: #{tpu_custom_call.1} parent=107 // pred_check
          %p800 = pneg %p147
        $region122: #{tpu_custom_call.1} parent=107 // pred_check_branch
          %802 = sbr.rel (%p800) target = $region124
        $region123: #{tpu_custom_call.1} parent=107 // pred_region
          %803 = dma.done %s796, 64
        $region124: #{tpu_custom_call.1} parent=107 // pred_fallthru
          _
        %s804 = sand.u32 %s48, 1
        %s805 = scalar_lea.sflag [#allocation9], %s804
        %s806 = sand.u32 %s160, 1
        %s807 = smul.addr %s806, 8
        %s808 = scalar_lea.vmem [#allocation10], %s807
        // Predicated region
        $region125: #{tpu_custom_call.1} parent=107 // pred_check
          %p809 = pneg %p173
        $region126: #{tpu_custom_call.1} parent=107 // pred_check_branch
          %811 = sbr.rel (%p809) target = $region128
        $region127: #{tpu_custom_call.1} parent=107 // pred_region
          %812 = dma.done %s805, 128
        $region128: #{tpu_custom_call.1} parent=107 // pred_fallthru
          _
        // Predicated region
        $region129: #{tpu_custom_call.1} parent=107 // pred_check
          %p813 = pneg %p241
        $region130: #{tpu_custom_call.1} parent=107 // pred_check_branch
          %815 = sbr.rel (%p813) target = $region132
        $region131: #{tpu_custom_call.1} parent=107 // pred_region
          %816 = dma.done [#allocation12], 16
        $region132: #{tpu_custom_call.1} parent=107 // pred_fallthru
          _
        // Predicated region
        $region133: #{tpu_custom_call.1} parent=107 // pred_check
          %p817 = pneg %p325
        $region134: #{tpu_custom_call.1} parent=107 // pred_check_branch
          %819 = sbr.rel (%p817) target = $region136
        $region135: #{tpu_custom_call.1} parent=107 // pred_region
          %820 = dma.done [#allocation12], 16
        $region136: #{tpu_custom_call.1} parent=107 // pred_fallthru
          _
        // Predicated region
        $region137: #{tpu_custom_call.1} parent=107 // pred_check
          %p821 = pneg %p346
        $region138: #{tpu_custom_call.1} parent=107 // pred_check_branch
          %823 = sbr.rel (%p821) target = $region140
        $region139: #{tpu_custom_call.1} parent=107 // pred_region
          %824 = dma.done [#allocation15], 16
        $region140: #{tpu_custom_call.1} parent=107 // pred_fallthru
          _
        // Predicated region
        $region141: #{tpu_custom_call.1} parent=107 // pred_check
          %p825 = pneg %p367
        $region142: #{tpu_custom_call.1} parent=107 // pred_check_branch
          %827 = sbr.rel (%p825) target = $region144
        $region143: #{tpu_custom_call.1} parent=107 // pred_region
          %828 = dma.done [#allocation15], 16
        $region144: #{tpu_custom_call.1} parent=107 // pred_fallthru
          _
        // Predicated region
        $region145: #{tpu_custom_call.1} parent=107 // pred_check
          %p829 = pneg %p409
        $region146: #{tpu_custom_call.1} parent=107 // pred_check_branch
          %831 = sbr.rel (%p829) target = $region148
        $region147: #{tpu_custom_call.1} parent=107 // pred_region
          %832 = dma.done [#allocation18], 16
        $region148: #{tpu_custom_call.1} parent=107 // pred_fallthru
          _
        %s833 = sand.u32 %s56, 1
        %s834 = scalar_lea.sflag [#allocation3], %s833
        %s835 = sand.u32 %s56, 1
        %s836 = scalar_lea.vmem [#allocation2], %s835
        %p837 = pneg %p69
        %p838 = pneg %p66
        %s839 = sand.u32 %s48, 1
        %s840 = scalar_lea.sflag [#allocation6], %s839
        %s841 = sand.u32 %s82, 1
        %s842 = smul.addr %s841, 4
        %s843 = scalar_lea.vmem [#allocation5], %s842
        %p844 = pneg %p95
        %p845 = pneg %p92
        %s846 = sand.u32 %s48, 1
        %s847 = scalar_lea.sflag [#allocation6], %s846
        %s848 = sand.u32 %s108, 1
        %s849 = scalar_lea.vmem [#allocation7], %s848
        %p850 = pneg %p121
        %p851 = pneg %p118
        %s852 = sand.u32 %s48, 1
        %s853 = scalar_lea.sflag [#allocation9], %s852
        %s854 = sand.u32 %s134, 1
        %s855 = smul.addr %s854, 4
        %s856 = scalar_lea.vmem [#allocation8], %s855
        %p857 = pneg %p147
        %p858 = pneg %p144
        %s859 = sand.u32 %s48, 1
        %s860 = scalar_lea.sflag [#allocation9], %s859
        %s861 = sand.u32 %s160, 1
        %s862 = smul.addr %s861, 8
        %s863 = scalar_lea.vmem [#allocation10], %s862
        %p864 = pneg %p173
        %p865 = pneg %p170
        %p866 = scmp.lt.s32.totalorder %s48, 1
        %s867 = scalar_select %p866, %s48, 1
        %s868 = smul.addr %s867, 8
        %s869 = scalar_lea.vmem %s5, %s868
        %p870 = pneg %p199
        %p871 = pneg %p196
        %p872 = pneg %p220
        %p873 = pneg %p217
        %p874 = pneg %p241
        %p875 = pneg %p238
        %p876 = pneg %p262
        %p877 = pneg %p259
        %p878 = pneg %p283
        %p879 = pneg %p280
        %p880 = pneg %p304
        %p881 = pneg %p301
        %p882 = pneg %p325
        %p883 = pneg %p322
        %p884 = pneg %p346
        %p885 = pneg %p343
        %p886 = pneg %p367
        %p887 = pneg %p364
        %p888 = pneg %p388
        %p889 = pneg %p385
        %p890 = pneg %p409
        %p891 = pneg %p406
        %p892 = pneg %p430
        %p893 = pneg %p427
        %p894 = pneg %p451
        %p895 = pneg %p448
        %p896 = pneg %p472
        %p897 = pneg %p469
        %p898 = pneg %p493
        %p899 = pneg %p490
        %p900 = pneg %p514
        %p901 = pneg %p511
        %p902 = pneg %p535
        %p903 = pneg %p532
        %p904 = pneg %p561
        %p905 = pneg %p558
        %s906 = sand.u32 %s548, 1
        %s907 = scalar_lea.sflag [#allocation4], %s906
        %s908 = sand.u32 %s548, 1
        %s909 = smul.addr %s908, 2
        %s910 = scalar_lea.vmem [#allocation19], %s909
        %p911 = scmp.lt.s32.totalorder %s48, 1
        %s912 = scalar_select %p911, %s48, 1
        %s913 = smul.addr %s912, 8
        %s914 = scalar_lea.vmem %s5, %s913
        %v916 = vld [vmem:[%s773] sm:$0x1]
        %v917 = vld [vmem:[%s782] sm:$0xf]
        %v918 = vld [vmem:[%s799] sm:$0xf]
        %v919 = vld [vmem:[%s808] sm:$0xff]
        %v920 = vld [vmem:[%s790] sm:$0x1]
        %v921 = vld [vmem:[%s914] sm:$0xff]
        %v922 = vld [vmem:[%s6] sm:$0xff]
        %v923 = vld [vmem:[%s6 + $0x8] sm:$0xff]
        %v924 = vld [vmem:[%s6 + $0x10] sm:$0xff]
        %v925 = vld [vmem:[%s6 + $0x18] sm:$0xff]
        %v926 = vld [vmem:[#allocation11] sm:$0x1]
        %vm927 = vcmask 261120
        %v929 = vsel %vm927, %v916, 0
        %931 = vmatprep.subr.mxu0 0.0
        %932 = vmatpush1.msra.mxu0 0.0
        %933 = vmatprep.subr.mxu0 0.0
        %934 = vmatpush1.msra.mxu0 0.0
        %935 = vmatprep.subr.mxu0 0.0
        %936 = vmatpush1.msra.mxu0 0.0
        %937 = vmatprep.subr.mxu0 0.0
        %938 = vmatpush1.msra.mxu0 0.0
        %939 = vmatprep.subr.mxu0 0.0
        %940 = vmatpush1.msra.mxu0 0.0
        %941 = vmatprep.subr.mxu0 0.0
        %942 = vmatpush1.msra.mxu0 0.0
        %943 = vmatprep.subr.mxu0 0.0
        %944 = vmatpush1.msra.mxu0 0.0
        %945 = vmatprep.subr.mxu0 0.0
        %946 = vmatpush1.msra.mxu0 0.0
        %947 = vmatprep.subr.mxu0 0.0
        %948 = vmatpush1.msra.mxu0 0.0
        %949 = vmatprep.subr.mxu0 0.0
        %950 = vmatpush1.msra.mxu0 0.0
        %951 = vmatprep.subr.mxu0 0.0
        %952 = vmatpush1.msra.mxu0 0.0
        %953 = vmatprep.subr.mxu0 0.0
        %954 = vmatpush1.msra.mxu0 0.0
        %955 = vmatprep.subr.mxu0 0.0
        %956 = vmatpush1.msra.mxu0 %v925
        %957 = vmatprep.subr.mxu0 0.0
        %958 = vmatpush1.msra.mxu0 %v924
        %959 = vmatprep.subr.mxu0 0.0
        %960 = vmatpush1.msra.mxu0 %v923
        %961 = vmatprep.subr.mxu0 0.0
        %962 = vmatpush1.msra.mxu0 %v922
        %963 = vmatprep.subr.mxu0 0.0
        %964 = vmatpush2.msra.mxu0 0.0
        %965 = vmatprep.subr.mxu0 0.0
        %966 = vmatpush2.msra.mxu0 0.0
        %967 = vmatprep.subr.mxu0 0.0
        %968 = vmatpush2.msra.mxu0 0.0
        %969 = vmatprep.subr.mxu0 0.0
        %970 = vmatpush2.msra.mxu0 0.0
        %971 = vmatprep.subr.mxu0 0.0
        %972 = vmatpush2.msra.mxu0 0.0
        %973 = vmatprep.subr.mxu0 0.0
        %974 = vmatpush2.msra.mxu0 0.0
        %975 = vmatprep.subr.mxu0 0.0
        %976 = vmatpush2.msra.mxu0 0.0
        %977 = vmatprep.subr.mxu0 0.0
        %978 = vmatpush2.msra.mxu0 0.0
        %979 = vmatprep.subr.mxu0 0.0
        %980 = vmatpush2.msra.mxu0 0.0
        %981 = vmatprep.subr.mxu0 0.0
        %982 = vmatpush2.msra.mxu0 0.0
        %983 = vmatprep.subr.mxu0 0.0
        %984 = vmatpush2.msra.mxu0 0.0
        %985 = vmatprep.subr.mxu0 0.0
        %986 = vmatpush2.msra.mxu0 0.0
        %987 = vmatprep.subr.mxu0 0.0
        %988 = vmatpush2.msra.mxu0 0.0
        %989 = vmatprep.subr.mxu0 0.0
        %990 = vmatpush2.msra.mxu0 0.0
        %991 = vmatprep.subr.mxu0 0.0
        %992 = vmatpush2.msra.mxu0 0.0
        %993 = vmatprep.subr.mxu0 0.0
        %994 = vmatpush2.msra.mxu0 0.0
        %995 = vmatprep.mubr.f32.mxu0 0.0
        %996 = vmatmul.mubr.f32.gmra.mxu0 %v929
        %v997 = vpop.f32.mrf.mxu0
        %v998 = vadd.f32 %v926, %v997
        %v999 = vpop.f32.mrf.mxu0
        %1000 = vdwg.mxu0
        %v1001 = vld [vmem:[%s8] sm:$0xf]
        %v1002 = vld [vmem:[%s8 + $0x4] sm:$0xf]
        %v1003 = vld [vmem:[%s8 + $0x8] sm:$0xf]
        %v1004 = vld [vmem:[%s8 + $0xc] sm:$0xf]
        %v1009 = vunpack.c.l.b16 %v1001
        %v1010 = vunpack.c.l.b16 %v1002
        %v1011 = vunpack.c.l.b16 %v1003
        %v1012 = vunpack.c.l.b16 %v1004
        %v1013 = vpack.c.b16 %v1010, %v1009
        %v1014 = vpack.c.b16 %v1012, %v1011
        %v1018 = vsel %vm927, %v917, 0
        %1020 = vmatprep.subr.bf16.mxu0 0
        %1021 = vmatpush1.bf16.msra.mxu0 0
        %1022 = vmatprep.subr.bf16.mxu0 0
        %1023 = vmatpush1.bf16.msra.mxu0 0
        %1024 = vmatprep.subr.bf16.mxu0 0
        %1025 = vmatpush1.bf16.msra.mxu0 0
        %1026 = vmatprep.subr.bf16.mxu0 0
        %1027 = vmatpush1.bf16.msra.mxu0 0
        %1028 = vmatprep.subr.bf16.mxu0 0
        %1029 = vmatpush1.bf16.msra.mxu0 0
        %1030 = vmatprep.subr.bf16.mxu0 0
        %1031 = vmatpush1.bf16.msra.mxu0 0
        %1032 = vmatprep.subr.bf16.mxu0 0
        %1033 = vmatpush1.bf16.msra.mxu0 %v1014
        %1034 = vmatprep.subr.bf16.mxu0 0
        %1035 = vmatpush1.bf16.msra.mxu0 %v1013
        %1036 = vmatprep.subr.bf16.mxu0 0
        %1037 = vmatpush2.bf16.msra.mxu0 0
        %1038 = vmatprep.subr.bf16.mxu0 0
        %1039 = vmatpush2.bf16.msra.mxu0 0
        %1040 = vmatprep.subr.bf16.mxu0 0
        %1041 = vmatpush2.bf16.msra.mxu0 0
        %1042 = vmatprep.subr.bf16.mxu0 0
        %1043 = vmatpush2.bf16.msra.mxu0 0
        %1044 = vmatprep.subr.bf16.mxu0 0
        %1045 = vmatpush2.bf16.msra.mxu0 0
        %1046 = vmatprep.subr.bf16.mxu0 0
        %1047 = vmatpush2.bf16.msra.mxu0 0
        %1048 = vmatprep.subr.bf16.mxu0 0
        %1049 = vmatpush2.bf16.msra.mxu0 0
        %1050 = vmatprep.subr.bf16.mxu0 0
        %1051 = vmatpush2.bf16.msra.mxu0 0
        %1052 = vmatprep.mubr.bf16.mxu0 0
        %1053 = vmatmul.mubr.bf16.gmra.mxu0 %v1018
        %v1054 = vpop.f32.mrf.mxu0
        %v1055 = vadd.f32 0.0, %v1054
        %v1056 = vpop.f32.mrf.mxu0
        %v1057 = vpop.f32.mrf.mxu0
        %v1058 = vpop.f32.mrf.mxu0
        %1059 = vdwg.mxu0
        %v1060 = vlaneseq
        %v1061 = vshrl.u32 %v1060, 7
        %v1062 = vsub.s32 0, %v1061
        %v1063 = vrot.slane %v998, %v1062
        %v1064 = vadd.f32 %v1055, %v1063
        %v1065 = vtanh.pop %v1064
        %v1066 = vpack.c.bf16 %v1065, %v1065
        %v1067 = vld [vmem:[%s9] sm:$0xf]
        %v1068 = vld [vmem:[%s9 + $0x4] sm:$0xf]
        %v1069 = vld [vmem:[%s9 + $0x8] sm:$0xf]
        %v1070 = vld [vmem:[%s9 + $0xc] sm:$0xf]
        %v1075 = vunpack.c.l.b16 %v1067
        %v1076 = vunpack.c.l.b16 %v1068
        %v1077 = vunpack.c.l.b16 %v1069
        %v1078 = vunpack.c.l.b16 %v1070
        %v1079 = vpack.c.b16 %v1076, %v1075
        %v1080 = vpack.c.b16 %v1078, %v1077
        %v1084 = vsel %vm927, %v1066, 0
        %1086 = vmatprep.subr.bf16.mxu0 0
        %1087 = vmatpush1.bf16.msra.mxu0 0
        %1088 = vmatprep.subr.bf16.mxu0 0
        %1089 = vmatpush1.bf16.msra.mxu0 0
        %1090 = vmatprep.subr.bf16.mxu0 0
        %1091 = vmatpush1.bf16.msra.mxu0 0
        %1092 = vmatprep.subr.bf16.mxu0 0
        %1093 = vmatpush1.bf16.msra.mxu0 0
        %1094 = vmatprep.subr.bf16.mxu0 0
        %1095 = vmatpush1.bf16.msra.mxu0 0
        %1096 = vmatprep.subr.bf16.mxu0 0
        %1097 = vmatpush1.bf16.msra.mxu0 0
        %1098 = vmatprep.subr.bf16.mxu0 0
        %1099 = vmatpush1.bf16.msra.mxu0 %v1080
        %1100 = vmatprep.subr.bf16.mxu0 0
        %1101 = vmatpush1.bf16.msra.mxu0 %v1079
        %1102 = vmatprep.subr.bf16.mxu0 0
        %1103 = vmatpush2.bf16.msra.mxu0 0
        %1104 = vmatprep.subr.bf16.mxu0 0
        %1105 = vmatpush2.bf16.msra.mxu0 0
        %1106 = vmatprep.subr.bf16.mxu0 0
        %1107 = vmatpush2.bf16.msra.mxu0 0
        %1108 = vmatprep.subr.bf16.mxu0 0
        %1109 = vmatpush2.bf16.msra.mxu0 0
        %1110 = vmatprep.subr.bf16.mxu0 0
        %1111 = vmatpush2.bf16.msra.mxu0 0
        %1112 = vmatprep.subr.bf16.mxu0 0
        %1113 = vmatpush2.bf16.msra.mxu0 0
        %1114 = vmatprep.subr.bf16.mxu0 0
        %1115 = vmatpush2.bf16.msra.mxu0 0
        %1116 = vmatprep.subr.bf16.mxu0 0
        %1117 = vmatpush2.bf16.msra.mxu0 0
        %1118 = vmatprep.mubr.bf16.mxu0 0
        %1119 = vmatmul.mubr.bf16.gmra.mxu0 %v1084
        %v1120 = vpop.f32.mrf.mxu0
        %v1121 = vadd.f32 0.0, %v1120
        %v1122 = vpop.f32.mrf.mxu0
        %v1123 = vpop.f32.mrf.mxu0
        %v1124 = vpop.f32.mrf.mxu0
        %1125 = vdwg.mxu0
        %vm1126 = vcmask 7168
        %v1127 = vsel %vm1126, %v1121, -inf
        %v1128 = vrot.slane %v1127, 4
        %v1129 = vmax.f32 %v1127, %v1128
        %v1130 = vrot.slane %v1129, 2
        %v1131 = vmax.f32 %v1129, %v1130
        %v1132 = vrot.slane %v1131, 1
        %v1133 = vmax.f32 %v1131, %v1132
        %v1134 = vsub.f32 %v1121, %v1133
        %v1135 = vmul.f32 %v1134, 1.442695
        %v1136 = vpow.pop %v1135
        %v1137 = vsel %vm1126, %v1136, 0.0
        %v1138 = vrot.slane %v1137, 4
        %v1139 = vadd.f32 %v1137, %v1138
        %v1140 = vrot.slane %v1139, 2
        %v1141 = vadd.f32 %v1139, %v1140
        %v1142 = vrot.slane %v1141, 1
        %v1143 = vadd.f32 %v1141, %v1142
        %v1144 = vrcp.pop %v1143
        %v1145 = vmul.f32 %v1136, %v1144
        %v1146 = vunpack.c.l.bf16 %v917
        %1148 = vset.pattern.permute.xlu0 0
        %1149 = vperm.xlu0 %1148, %v1145
        %v1150 = vpop.permute.xlu0 %1149
        %v1152 = vmul.f32 %v1150, %v1146
        %v1153 = vsel %vm927, %v1152, 0.0
        %v1154 = vrot.slane %v1153, 4
        %v1155 = vadd.f32 %v1153, %v1154
        %v1156 = vrot.slane %v1155, 2
        %v1157 = vadd.f32 %v1155, %v1156
        %v1158 = vrot.slane %v1157, 1
        %v1159 = vadd.f32 %v1157, %v1158
        %v1160 = vld [vmem:[%s10] sm:$0xff]
        %v1161 = vld [vmem:[%s10 + $0x8] sm:$0xff]
        %v1162 = vld [vmem:[%s10 + $0x10] sm:$0xff]
        %v1163 = vld [vmem:[%s10 + $0x18] sm:$0xff]
        %v1164 = vld [vmem:[%s10 + $0x20] sm:$0xff]
        %v1165 = vld [vmem:[%s10 + $0x28] sm:$0xff]
        %v1166 = vld [vmem:[%s10 + $0x30] sm:$0xff]
        %v1167 = vld [vmem:[%s10 + $0x38] sm:$0xff]
        %v1169 = vsel %vm927, %v920, 0
        %1171 = vmatprep.subr.mxu0 0.0
        %1172 = vmatpush1.msra.mxu0 0.0
        %1173 = vmatprep.subr.mxu0 0.0
        %1174 = vmatpush1.msra.mxu0 0.0
        %1175 = vmatprep.subr.mxu0 0.0
        %1176 = vmatpush1.msra.mxu0 0.0
        %1177 = vmatprep.subr.mxu0 0.0
        %1178 = vmatpush1.msra.mxu0 0.0
        %1179 = vmatprep.subr.mxu0 0.0
        %1180 = vmatpush1.msra.mxu0 0.0
        %1181 = vmatprep.subr.mxu0 0.0
        %1182 = vmatpush1.msra.mxu0 0.0
        %1183 = vmatprep.subr.mxu0 0.0
        %1184 = vmatpush1.msra.mxu0 0.0
        %1185 = vmatprep.subr.mxu0 0.0
        %1186 = vmatpush1.msra.mxu0 0.0
        %1187 = vmatprep.subr.mxu0 0.0
        %1188 = vmatpush1.msra.mxu0 0.0
        %1189 = vmatprep.subr.mxu0 0.0
        %1190 = vmatpush1.msra.mxu0 0.0
        %1191 = vmatprep.subr.mxu0 0.0
        %1192 = vmatpush1.msra.mxu0 0.0
        %1193 = vmatprep.subr.mxu0 0.0
        %1194 = vmatpush1.msra.mxu0 0.0
        %1195 = vmatprep.subr.mxu0 0.0
        %1196 = vmatpush1.msra.mxu0 %v1167
        %1197 = vmatprep.subr.mxu0 0.0
        %1198 = vmatpush1.msra.mxu0 %v1166
        %1199 = vmatprep.subr.mxu0 0.0
        %1200 = vmatpush1.msra.mxu0 %v1165
        %1201 = vmatprep.subr.mxu0 0.0
        %1202 = vmatpush1.msra.mxu0 %v1164
        %1203 = vmatprep.subr.mxu0 0.0
        %1204 = vmatpush2.msra.mxu0 0.0
        %1205 = vmatprep.subr.mxu0 0.0
        %1206 = vmatpush2.msra.mxu0 0.0
        %1207 = vmatprep.subr.mxu0 0.0
        %1208 = vmatpush2.msra.mxu0 0.0
        %1209 = vmatprep.subr.mxu0 0.0
        %1210 = vmatpush2.msra.mxu0 0.0
        %1211 = vmatprep.subr.mxu0 0.0
        %1212 = vmatpush2.msra.mxu0 0.0
        %1213 = vmatprep.subr.mxu0 0.0
        %1214 = vmatpush2.msra.mxu0 0.0
        %1215 = vmatprep.subr.mxu0 0.0
        %1216 = vmatpush2.msra.mxu0 0.0
        %1217 = vmatprep.subr.mxu0 0.0
        %1218 = vmatpush2.msra.mxu0 0.0
        %1219 = vmatprep.subr.mxu0 0.0
        %1220 = vmatpush2.msra.mxu0 0.0
        %1221 = vmatprep.subr.mxu0 0.0
        %1222 = vmatpush2.msra.mxu0 0.0
        %1223 = vmatprep.subr.mxu0 0.0
        %1224 = vmatpush2.msra.mxu0 0.0
        %1225 = vmatprep.subr.mxu0 0.0
        %1226 = vmatpush2.msra.mxu0 0.0
        %1227 = vmatprep.subr.mxu0 0.0
        %1228 = vmatpush2.msra.mxu0 0.0
        %1229 = vmatprep.subr.mxu0 0.0
        %1230 = vmatpush2.msra.mxu0 0.0
        %1231 = vmatprep.subr.mxu0 0.0
        %1232 = vmatpush2.msra.mxu0 0.0
        %1233 = vmatprep.subr.mxu0 0.0
        %1234 = vmatpush2.msra.mxu0 0.0
        %1235 = vmatprep.mubr.f32.mxu0 0.0
        %1236 = vmatmul.mubr.f32.gmra.mxu0 %v1169
        %v1237 = vpop.f32.mrf.mxu0
        %v1238 = vadd.f32 0.0, %v1237
        %v1239 = vpop.f32.mrf.mxu0
        %1240 = vdwg.mxu0
        %v1242 = vsel %vm927, %v1159, 0
        %1244 = vmatprep.subr.mxu0 0.0
        %1245 = vmatpush1.msra.mxu0 0.0
        %1246 = vmatprep.subr.mxu0 0.0
        %1247 = vmatpush1.msra.mxu0 0.0
        %1248 = vmatprep.subr.mxu0 0.0
        %1249 = vmatpush1.msra.mxu0 0.0
        %1250 = vmatprep.subr.mxu0 0.0
        %1251 = vmatpush1.msra.mxu0 0.0
        %1252 = vmatprep.subr.mxu0 0.0
        %1253 = vmatpush1.msra.mxu0 0.0
        %1254 = vmatprep.subr.mxu0 0.0
        %1255 = vmatpush1.msra.mxu0 0.0
        %1256 = vmatprep.subr.mxu0 0.0
        %1257 = vmatpush1.msra.mxu0 0.0
        %1258 = vmatprep.subr.mxu0 0.0
        %1259 = vmatpush1.msra.mxu0 0.0
        %1260 = vmatprep.subr.mxu0 0.0
        %1261 = vmatpush1.msra.mxu0 0.0
        %1262 = vmatprep.subr.mxu0 0.0
        %1263 = vmatpush1.msra.mxu0 0.0
        %1264 = vmatprep.subr.mxu0 0.0
        %1265 = vmatpush1.msra.mxu0 0.0
        %1266 = vmatprep.subr.mxu0 0.0
        %1267 = vmatpush1.msra.mxu0 0.0
        %1268 = vmatprep.subr.mxu0 0.0
        %1269 = vmatpush1.msra.mxu0 %v1163
        %1270 = vmatprep.subr.mxu0 0.0
        %1271 = vmatpush1.msra.mxu0 %v1162
        %1272 = vmatprep.subr.mxu0 0.0
        %1273 = vmatpush1.msra.mxu0 %v1161
        %1274 = vmatprep.subr.mxu0 0.0
        %1275 = vmatpush1.msra.mxu0 %v1160
        %1276 = vmatprep.subr.mxu0 0.0
        %1277 = vmatpush2.msra.mxu0 0.0
        %1278 = vmatprep.subr.mxu0 0.0
        %1279 = vmatpush2.msra.mxu0 0.0
        %1280 = vmatprep.subr.mxu0 0.0
        %1281 = vmatpush2.msra.mxu0 0.0
        %1282 = vmatprep.subr.mxu0 0.0
        %1283 = vmatpush2.msra.mxu0 0.0
        %1284 = vmatprep.subr.mxu0 0.0
        %1285 = vmatpush2.msra.mxu0 0.0
        %1286 = vmatprep.subr.mxu0 0.0
        %1287 = vmatpush2.msra.mxu0 0.0
        %1288 = vmatprep.subr.mxu0 0.0
        %1289 = vmatpush2.msra.mxu0 0.0
        %1290 = vmatprep.subr.mxu0 0.0
        %1291 = vmatpush2.msra.mxu0 0.0
        %1292 = vmatprep.subr.mxu0 0.0
        %1293 = vmatpush2.msra.mxu0 0.0
        %1294 = vmatprep.subr.mxu0 0.0
        %1295 = vmatpush2.msra.mxu0 0.0
        %1296 = vmatprep.subr.mxu0 0.0
        %1297 = vmatpush2.msra.mxu0 0.0
        %1298 = vmatprep.subr.mxu0 0.0
        %1299 = vmatpush2.msra.mxu0 0.0
        %1300 = vmatprep.subr.mxu0 0.0
        %1301 = vmatpush2.msra.mxu0 0.0
        %1302 = vmatprep.subr.mxu0 0.0
        %1303 = vmatpush2.msra.mxu0 0.0
        %1304 = vmatprep.subr.mxu0 0.0
        %1305 = vmatpush2.msra.mxu0 0.0
        %1306 = vmatprep.subr.mxu0 0.0
        %1307 = vmatpush2.msra.mxu0 0.0
        %1308 = vmatprep.mubr.f32.mxu0 0.0
        %1309 = vmatmul.mubr.f32.gmra.mxu0 %v1242
        %v1310 = vpop.f32.mrf.mxu0
        %v1311 = vadd.f32 %v1238, %v1310
        %v1312 = vpop.f32.mrf.mxu0
        %1313 = vdwg.mxu0
        %v1314 = vld [vmem:[#allocation13] sm:$0x1]
        %v1315 = vadd.f32 %v1311, %v1314
        %1317 = vrot.lane.b32.xlu0 %v998, 96
        %v1318 = vpop.permute.xlu0 %1317
        %v1320 = vadd.f32 %v1315, %v1318
        %v1321 = vxor.u32 %v1320, 2147483648
        %v1322 = vmul.f32 %v1321, 1.442695
        %v1323 = vpow.pop %v1322
        %v1324 = vadd.f32 %v1323, 1.0
        %v1325 = vrcp.pop %v1324
        %v1326 = vmul.f32 1.0, %v1325
        %1327 = vrot.lane.b32.xlu0 %v998, 32
        %v1328 = vpop.permute.xlu0 %1327
        %v1330 = vmul.f32 %v1326, %v1328
        %1332 = vrot.lane.b32.xlu0 %v1330, 64
        %v1333 = vpop.permute.xlu0 %1332
        %v1335 = vadd.f32 %v1315, %v1333
        %v1336 = vtanh.pop %v1335
        %v1337 = vsub.f32 1.0, %v1326
        %1339 = vrot.lane.b32.xlu0 %v1336, 96
        %v1340 = vpop.permute.xlu0 %1339
        %v1342 = vmul.f32 %v1337, %v1340
        %v1343 = vlaneseq
        %v1344 = vshrl.u32 %v1343, 7
        %v1345 = vsub.s32 0, %v1344
        %v1346 = vrot.slane %v916, %v1345
        %1347 = vrot.lane.b32.xlu0 %v1346, 32
        %v1348 = vpop.permute.xlu0 %1347
        %v1350 = vmul.f32 %v1326, %v1348
        %v1351 = vadd.f32 %v1342, %v1350
        %1353 = vrot.lane.b32.xlu0 %v1351, 96
        %v1354 = vpop.permute.xlu0 %1353
        %vm1356 = vcmask 253952
        %v1357 = vsel %vm1356, %v1354, 0.0
        %1358 = vadd.xlane.f32.xlu0 %v1357
        %v1359 = vpop.xlane.xlu0 %1358
        %v1360 = vrcp.pop 32.0
        %v1361 = vmul.f32 %v1359, %v1360
        %v1362 = vsub.f32 %v1351, %v1361
        %v1363 = vmul.f32 %v1362, %v1362
        %1365 = vrot.lane.b32.xlu0 %v1363, 96
        %v1366 = vpop.permute.xlu0 %1365
        %v1368 = vsel %vm1356, %v1366, 0.0
        %1369 = vadd.xlane.f32.xlu0 %v1368
        %v1370 = vpop.xlane.xlu0 %1369
        %v1371 = vrcp.pop 31.0
        %v1372 = vmul.f32 %v1370, %v1371
        %v1373 = vrsqrt.pop %v1372
        %v1374 = vmul.f32 %v1372, %v1373
        %vm1375 = vcmp.eq.f32.partialorder %v1372, inf
        %v1376 = vsel %vm1375, %v1372, %v1374
        %vm1377 = vcmp.eq.f32.partialorder %v1372, 0.0
        %v1378 = vand.u32 %v1372, 2147483648
        %v1379 = vsel %vm1377, %v1378, %v1376
        %v1380 = vadd.f32 %v1379, 0.001
        %v1381 = vrcp.pop %v1380
        %v1382 = vmul.f32 %v1362, %v1381
        %v1383 = vld [vmem:[#allocation14] sm:$0x1]
        %v1385 = vlaneseq
        %v1386 = vshrl.u32 %v1385, 7
        %v1387 = vsub.s32 0, %v1386
        %v1388 = vrot.slane %v1383, %v1387
        %1389 = vrot.lane.b32.xlu0 %v1388, 32
        %v1390 = vpop.permute.xlu0 %1389
        %v1392 = vmul.f32 %v1382, %v1390
        %v1393 = vld [vmem:[#allocation16] sm:$0x1]
        %v1395 = vlaneseq
        %v1396 = vshrl.u32 %v1395, 7
        %v1397 = vsub.s32 0, %v1396
        %v1398 = vrot.slane %v1393, %v1397
        %1399 = vrot.lane.b32.xlu0 %v1398, 32
        %v1400 = vpop.permute.xlu0 %1399
        %v1402 = vadd.f32 %v1392, %v1400
        %v1403 = vld [vmem:[%s14] sm:$0xff]
        %v1404 = vld [vmem:[%s14 + $0x8] sm:$0xff]
        %v1405 = vld [vmem:[%s14 + $0x10] sm:$0xff]
        %v1406 = vld [vmem:[%s14 + $0x18] sm:$0xff]
        %v1407 = vld [vmem:[#allocation17] sm:$0x1]
        %1409 = vrot.lane.b32.xlu0 %v1402, 96
        %v1410 = vpop.permute.xlu0 %1409
        %v1411 = vsel %vm927, %v1410, 0
        %1413 = vmatprep.subr.mxu0 0.0
        %1414 = vmatpush1.msra.mxu0 0.0
        %1415 = vmatprep.subr.mxu0 0.0
        %1416 = vmatpush1.msra.mxu0 0.0
        %1417 = vmatprep.subr.mxu0 0.0
        %1418 = vmatpush1.msra.mxu0 0.0
        %1419 = vmatprep.subr.mxu0 0.0
        %1420 = vmatpush1.msra.mxu0 0.0
        %1421 = vmatprep.subr.mxu0 0.0
        %1422 = vmatpush1.msra.mxu0 0.0
        %1423 = vmatprep.subr.mxu0 0.0
        %1424 = vmatpush1.msra.mxu0 0.0
        %1425 = vmatprep.subr.mxu0 0.0
        %1426 = vmatpush1.msra.mxu0 0.0
        %1427 = vmatprep.subr.mxu0 0.0
        %1428 = vmatpush1.msra.mxu0 0.0
        %1429 = vmatprep.subr.mxu0 0.0
        %1430 = vmatpush1.msra.mxu0 0.0
        %1431 = vmatprep.subr.mxu0 0.0
        %1432 = vmatpush1.msra.mxu0 0.0
        %1433 = vmatprep.subr.mxu0 0.0
        %1434 = vmatpush1.msra.mxu0 0.0
        %1435 = vmatprep.subr.mxu0 0.0
        %1436 = vmatpush1.msra.mxu0 0.0
        %1437 = vmatprep.subr.mxu0 0.0
        %1438 = vmatpush1.msra.mxu0 %v1406
        %1439 = vmatprep.subr.mxu0 0.0
        %1440 = vmatpush1.msra.mxu0 %v1405
        %1441 = vmatprep.subr.mxu0 0.0
        %1442 = vmatpush1.msra.mxu0 %v1404
        %1443 = vmatprep.subr.mxu0 0.0
        %1444 = vmatpush1.msra.mxu0 %v1403
        %1445 = vmatprep.subr.mxu0 0.0
        %1446 = vmatpush2.msra.mxu0 0.0
        %1447 = vmatprep.subr.mxu0 0.0
        %1448 = vmatpush2.msra.mxu0 0.0
        %1449 = vmatprep.subr.mxu0 0.0
        %1450 = vmatpush2.msra.mxu0 0.0
        %1451 = vmatprep.subr.mxu0 0.0
        %1452 = vmatpush2.msra.mxu0 0.0
        %1453 = vmatprep.subr.mxu0 0.0
        %1454 = vmatpush2.msra.mxu0 0.0
        %1455 = vmatprep.subr.mxu0 0.0
        %1456 = vmatpush2.msra.mxu0 0.0
        %1457 = vmatprep.subr.mxu0 0.0
        %1458 = vmatpush2.msra.mxu0 0.0
        %1459 = vmatprep.subr.mxu0 0.0
        %1460 = vmatpush2.msra.mxu0 0.0
        %1461 = vmatprep.subr.mxu0 0.0
        %1462 = vmatpush2.msra.mxu0 0.0
        %1463 = vmatprep.subr.mxu0 0.0
        %1464 = vmatpush2.msra.mxu0 0.0
        %1465 = vmatprep.subr.mxu0 0.0
        %1466 = vmatpush2.msra.mxu0 0.0
        %1467 = vmatprep.subr.mxu0 0.0
        %1468 = vmatpush2.msra.mxu0 0.0
        %1469 = vmatprep.subr.mxu0 0.0
        %1470 = vmatpush2.msra.mxu0 0.0
        %1471 = vmatprep.subr.mxu0 0.0
        %1472 = vmatpush2.msra.mxu0 0.0
        %1473 = vmatprep.subr.mxu0 0.0
        %1474 = vmatpush2.msra.mxu0 0.0
        %1475 = vmatprep.subr.mxu0 0.0
        %1476 = vmatpush2.msra.mxu0 0.0
        %1477 = vmatprep.mubr.f32.mxu0 0.0
        %1478 = vmatmul.mubr.f32.gmra.mxu0 %v1411
        %v1479 = vpop.f32.mrf.mxu0
        %v1480 = vadd.f32 %v1407, %v1479
        %v1481 = vpop.f32.mrf.mxu0
        %1482 = vdwg.mxu0
        %v1483 = vlaneseq
        %v1484 = vshrl.u32 %v1483, 7
        %v1485 = vsub.s32 0, %v1484
        %v1486 = vrot.slane %v1480, %v1485
        %1488 = vrot.lane.b32.xlu0 %v1486, 96
        %v1489 = vpop.permute.xlu0 %1488
        %v1491 = vadd.f32 %v1055, %v1489
        %v1492 = vtanh.pop %v1491
        %v1493 = vpack.c.bf16 %v1492, %v1492
        %v1494 = vld [vmem:[%s17] sm:$0xf]
        %v1495 = vld [vmem:[%s17 + $0x4] sm:$0xf]
        %v1496 = vld [vmem:[%s17 + $0x8] sm:$0xf]
        %v1497 = vld [vmem:[%s17 + $0xc] sm:$0xf]
        %v1498 = vld [vmem:[%s19] sm:$0x1]
        %v1500 = vlaneseq
        %v1501 = vshrl.u32 %v1500, 7
        %v1502 = vsub.s32 0, %v1501
        %v1503 = vrot.slane %v1498, %v1502
        %1506 = vrot.lane.b32.xlu0 %v1493, 96
        %v1507 = vpop.permute.xlu0 %1506
        %v1512 = vunpack.c.l.b16 %v1494
        %v1513 = vunpack.c.l.b16 %v1495
        %v1514 = vunpack.c.l.b16 %v1496
        %v1515 = vunpack.c.l.b16 %v1497
        %v1516 = vpack.c.b16 %v1513, %v1512
        %v1517 = vpack.c.b16 %v1515, %v1514
        %v1521 = vsel %vm927, %v1507, 0
        %1523 = vmatprep.subr.bf16.mxu0 0
        %1524 = vmatpush1.bf16.msra.mxu0 0
        %1525 = vmatprep.subr.bf16.mxu0 0
        %1526 = vmatpush1.bf16.msra.mxu0 0
        %1527 = vmatprep.subr.bf16.mxu0 0
        %1528 = vmatpush1.bf16.msra.mxu0 0
        %1529 = vmatprep.subr.bf16.mxu0 0
        %1530 = vmatpush1.bf16.msra.mxu0 0
        %1531 = vmatprep.subr.bf16.mxu0 0
        %1532 = vmatpush1.bf16.msra.mxu0 0
        %1533 = vmatprep.subr.bf16.mxu0 0
        %1534 = vmatpush1.bf16.msra.mxu0 0
        %1535 = vmatprep.subr.bf16.mxu0 0
        %1536 = vmatpush1.bf16.msra.mxu0 %v1517
        %1537 = vmatprep.subr.bf16.mxu0 0
        %1538 = vmatpush1.bf16.msra.mxu0 %v1516
        %1539 = vmatprep.subr.bf16.mxu0 0
        %1540 = vmatpush2.bf16.msra.mxu0 0
        %1541 = vmatprep.subr.bf16.mxu0 0
        %1542 = vmatpush2.bf16.msra.mxu0 0
        %1543 = vmatprep.subr.bf16.mxu0 0
        %1544 = vmatpush2.bf16.msra.mxu0 0
        %1545 = vmatprep.subr.bf16.mxu0 0
        %1546 = vmatpush2.bf16.msra.mxu0 0
        %1547 = vmatprep.subr.bf16.mxu0 0
        %1548 = vmatpush2.bf16.msra.mxu0 0
        %1549 = vmatprep.subr.bf16.mxu0 0
        %1550 = vmatpush2.bf16.msra.mxu0 0
        %1551 = vmatprep.subr.bf16.mxu0 0
        %1552 = vmatpush2.bf16.msra.mxu0 0
        %1553 = vmatprep.subr.bf16.mxu0 0
        %1554 = vmatpush2.bf16.msra.mxu0 0
        %1555 = vmatprep.mubr.bf16.mxu0 0
        %1556 = vmatmul.mubr.bf16.gmra.mxu0 %v1521
        %v1557 = vpop.f32.mrf.mxu0
        %v1558 = vadd.f32 %v1503, %v1557
        %v1559 = vpop.f32.mrf.mxu0
        %v1560 = vpop.f32.mrf.mxu0
        %v1561 = vpop.f32.mrf.mxu0
        %1562 = vdwg.mxu0
        %v1563 = vld [vmem:[%s16] sm:$0xf]
        %v1564 = vld [vmem:[%s16 + $0x4] sm:$0xf]
        %v1565 = vld [vmem:[%s16 + $0x8] sm:$0xf]
        %v1566 = vld [vmem:[%s16 + $0xc] sm:$0xf]
        %v1571 = vunpack.c.l.b16 %v1563
        %v1572 = vunpack.c.l.b16 %v1564
        %v1573 = vunpack.c.l.b16 %v1565
        %v1574 = vunpack.c.l.b16 %v1566
        %v1575 = vpack.c.b16 %v1572, %v1571
        %v1576 = vpack.c.b16 %v1574, %v1573
        %1579 = vrot.lane.b32.xlu0 %v1486, 32
        %v1580 = vpop.permute.xlu0 %1579
        %v1583 = vsel %vm927, %v918, 0
        %1585 = vmatprep.subr.bf16.mxu0 0
        %1586 = vmatpush1.bf16.msra.mxu0 0
        %1587 = vmatprep.subr.bf16.mxu0 0
        %1588 = vmatpush1.bf16.msra.mxu0 0
        %1589 = vmatprep.subr.bf16.mxu0 0
        %1590 = vmatpush1.bf16.msra.mxu0 0
        %1591 = vmatprep.subr.bf16.mxu0 0
        %1592 = vmatpush1.bf16.msra.mxu0 0
        %1593 = vmatprep.subr.bf16.mxu0 0
        %1594 = vmatpush1.bf16.msra.mxu0 0
        %1595 = vmatprep.subr.bf16.mxu0 0
        %1596 = vmatpush1.bf16.msra.mxu0 0
        %1597 = vmatprep.subr.bf16.mxu0 0
        %1598 = vmatpush1.bf16.msra.mxu0 %v1576
        %1599 = vmatprep.subr.bf16.mxu0 0
        %1600 = vmatpush1.bf16.msra.mxu0 %v1575
        %1601 = vmatprep.subr.bf16.mxu0 0
        %1602 = vmatpush2.bf16.msra.mxu0 0
        %1603 = vmatprep.subr.bf16.mxu0 0
        %1604 = vmatpush2.bf16.msra.mxu0 0
        %1605 = vmatprep.subr.bf16.mxu0 0
        %1606 = vmatpush2.bf16.msra.mxu0 0
        %1607 = vmatprep.subr.bf16.mxu0 0
        %1608 = vmatpush2.bf16.msra.mxu0 0
        %1609 = vmatprep.subr.bf16.mxu0 0
        %1610 = vmatpush2.bf16.msra.mxu0 0
        %1611 = vmatprep.subr.bf16.mxu0 0
        %1612 = vmatpush2.bf16.msra.mxu0 0
        %1613 = vmatprep.subr.bf16.mxu0 0
        %1614 = vmatpush2.bf16.msra.mxu0 0
        %1615 = vmatprep.subr.bf16.mxu0 0
        %1616 = vmatpush2.bf16.msra.mxu0 0
        %1617 = vmatprep.mubr.bf16.mxu0 0
        %1618 = vmatmul.mubr.bf16.gmra.mxu0 %v1583
        %v1619 = vpop.f32.mrf.mxu0
        %v1620 = vadd.f32 %v1580, %v1619
        %v1621 = vpop.f32.mrf.mxu0
        %v1622 = vpop.f32.mrf.mxu0
        %v1623 = vpop.f32.mrf.mxu0
        %1624 = vdwg.mxu0
        %v1625 = vtanh.pop %v1620
        %v1626 = vpack.c.bf16 %v1625, %v1625
        %v1627 = vld [vmem:[%s18] sm:$0xf]
        %v1628 = vld [vmem:[%s18 + $0x4] sm:$0xf]
        %v1629 = vld [vmem:[%s18 + $0x8] sm:$0xf]
        %v1630 = vld [vmem:[%s18 + $0xc] sm:$0xf]
        %v1635 = vunpack.c.l.b16 %v1627
        %v1636 = vunpack.c.l.b16 %v1628
        %v1637 = vunpack.c.l.b16 %v1629
        %v1638 = vunpack.c.l.b16 %v1630
        %v1639 = vpack.c.b16 %v1636, %v1635
        %v1640 = vpack.c.b16 %v1638, %v1637
        %1643 = vrot.lane.b32.xlu0 %v1503, 127
        %v1644 = vpop.permute.xlu0 %1643
        %v1647 = vsel %vm927, %v1626, 0
        %1649 = vmatprep.subr.bf16.mxu0 0
        %1650 = vmatpush1.bf16.msra.mxu0 0
        %1651 = vmatprep.subr.bf16.mxu0 0
        %1652 = vmatpush1.bf16.msra.mxu0 0
        %1653 = vmatprep.subr.bf16.mxu0 0
        %1654 = vmatpush1.bf16.msra.mxu0 0
        %1655 = vmatprep.subr.bf16.mxu0 0
        %1656 = vmatpush1.bf16.msra.mxu0 0
        %1657 = vmatprep.subr.bf16.mxu0 0
        %1658 = vmatpush1.bf16.msra.mxu0 0
        %1659 = vmatprep.subr.bf16.mxu0 0
        %1660 = vmatpush1.bf16.msra.mxu0 0
        %1661 = vmatprep.subr.bf16.mxu0 0
        %1662 = vmatpush1.bf16.msra.mxu0 %v1640
        %1663 = vmatprep.subr.bf16.mxu0 0
        %1664 = vmatpush1.bf16.msra.mxu0 %v1639
        %1665 = vmatprep.subr.bf16.mxu0 0
        %1666 = vmatpush2.bf16.msra.mxu0 0
        %1667 = vmatprep.subr.bf16.mxu0 0
        %1668 = vmatpush2.bf16.msra.mxu0 0
        %1669 = vmatprep.subr.bf16.mxu0 0
        %1670 = vmatpush2.bf16.msra.mxu0 0
        %1671 = vmatprep.subr.bf16.mxu0 0
        %1672 = vmatpush2.bf16.msra.mxu0 0
        %1673 = vmatprep.subr.bf16.mxu0 0
        %1674 = vmatpush2.bf16.msra.mxu0 0
        %1675 = vmatprep.subr.bf16.mxu0 0
        %1676 = vmatpush2.bf16.msra.mxu0 0
        %1677 = vmatprep.subr.bf16.mxu0 0
        %1678 = vmatpush2.bf16.msra.mxu0 0
        %1679 = vmatprep.subr.bf16.mxu0 0
        %1680 = vmatpush2.bf16.msra.mxu0 0
        %1681 = vmatprep.mubr.bf16.mxu0 0
        %1682 = vmatmul.mubr.bf16.gmra.mxu0 %v1647
        %v1683 = vpop.f32.mrf.mxu0
        %v1684 = vadd.f32 %v1644, %v1683
        %v1685 = vpop.f32.mrf.mxu0
        %v1686 = vpop.f32.mrf.mxu0
        %v1687 = vpop.f32.mrf.mxu0
        %1688 = vdwg.mxu0
        %vm1689 = vcmask 516096
        %v1690 = vsel %vm1689, %v1480, -inf
        %1691 = vmax.xlane.f32.xlu0 %v1690
        %v1692 = vpop.xlane.xlu0 %1691
        %v1693 = vsel %vm1126, %v1558, -inf
        %v1694 = vrot.slane %v1693, 4
        %v1695 = vmax.f32 %v1693, %v1694
        %v1696 = vrot.slane %v1695, 2
        %v1697 = vmax.f32 %v1695, %v1696
        %v1698 = vrot.slane %v1697, 1
        %v1699 = vmax.f32 %v1697, %v1698
        %v1700 = vsel %vm1126, %v1684, -inf
        %v1701 = vrot.slane %v1700, 4
        %v1702 = vmax.f32 %v1700, %v1701
        %v1703 = vrot.slane %v1702, 2
        %v1704 = vmax.f32 %v1702, %v1703
        %v1705 = vrot.slane %v1704, 1
        %v1706 = vmax.f32 %v1704, %v1705
        %v1707 = vmax.f32 %v1699, %v1706
        %v1708 = vmax.f32 %v1692, %v1707
        %1710 = vset.pattern.permute.xlu0 0
        %1711 = vperm.xlu0 %1710, %v1708
        %v1712 = vpop.permute.xlu0 %1711
        %v1714 = vsub.f32 %v1480, %v1712
        %v1715 = vmul.f32 %v1714, 1.442695
        %v1716 = vpow.pop %v1715
        %v1717 = vlaneseq
        %v1718 = vshrl.u32 %v1717, 7
        %v1719 = vsub.s32 0, %v1718
        %v1720 = vrot.slane %v1708, %v1719
        %v1721 = vsub.f32 %v1558, %v1720
        %v1722 = vmul.f32 %v1721, 1.442695
        %v1723 = vpow.pop %v1722
        %v1724 = vsub.f32 %v1684, %v1720
        %v1725 = vmul.f32 %v1724, 1.442695
        %v1726 = vpow.pop %v1725
        %v1727 = vsel %vm1689, %v1716, 0.0
        %1728 = vadd.xlane.f32.xlu0 %v1727
        %v1729 = vpop.xlane.xlu0 %1728
        %v1730 = vsel %vm1126, %v1723, 0.0
        %v1731 = vrot.slane %v1730, 4
        %v1732 = vadd.f32 %v1730, %v1731
        %v1733 = vrot.slane %v1732, 2
        %v1734 = vadd.f32 %v1732, %v1733
        %v1735 = vrot.slane %v1734, 1
        %v1736 = vadd.f32 %v1734, %v1735
        %v1737 = vadd.f32 %v1729, %v1736
        %v1738 = vsel %vm1126, %v1726, 0.0
        %v1739 = vrot.slane %v1738, 4
        %v1740 = vadd.f32 %v1738, %v1739
        %v1741 = vrot.slane %v1740, 2
        %v1742 = vadd.f32 %v1740, %v1741
        %v1743 = vrot.slane %v1742, 1
        %v1744 = vadd.f32 %v1742, %v1743
        %v1745 = vadd.f32 %v1737, %v1744
        %1747 = vset.pattern.permute.xlu0 0
        %1748 = vperm.xlu0 %1747, %v1745
        %v1749 = vpop.permute.xlu0 %1748
        %v1751 = vrcp.pop %v1749
        %v1752 = vmul.f32 %v1716, %v1751
        %v1753 = vlaneseq
        %v1754 = vshrl.u32 %v1753, 7
        %v1755 = vsub.s32 0, %v1754
        %v1756 = vrot.slane %v1745, %v1755
        %v1757 = vrcp.pop %v1756
        %v1758 = vmul.f32 %v1723, %v1757
        %v1759 = vmul.f32 %v1726, %v1757
        %v1760 = vlaneseq
        %v1761 = vand.u32 %v1760, 127
        %vm1762 = vcmp.ge.s32.totalorder %v1761, 4
        %v1763 = vsel %vm1762, 1, 0
        %v1764 = vcvt.s32.f32 %v1763
        %1765 = vset.pattern.permute.xlu0 0
        %1766 = vperm.xlu0 %1765, %v921
        %v1767 = vpop.permute.xlu0 %1766
        %vm1768 = vcmp.eq.s32.totalorder %v1761, %v1767
        %1770 = vset.pattern.permute.xlu0 0
        %1771 = vperm.xlu0 %1770, %v1758
        %v1772 = vpop.permute.xlu0 %1771
        %v1774 = vsel %vm1768, %v1772, 0.0
        %vm1775 = vcmask 523264
        %v1776 = vsel %vm1775, %v1774, 0.0
        %v1777 = vrot.slane %v1776, 4
        %v1778 = vadd.f32 %v1776, %v1777
        %v1779 = vrot.slane %v1778, 2
        %v1780 = vadd.f32 %v1778, %v1779
        %v1781 = vrot.slane %v1780, 1
        %v1782 = vadd.f32 %v1780, %v1781
        %1784 = vset.pattern.permute.xlu0 0
        %1785 = vperm.xlu0 %1784, %v1759
        %v1786 = vpop.permute.xlu0 %1785
        %v1788 = vmul.f32 %v1786, %v919
        %v1789 = vsel %vm1775, %v1788, 0.0
        %v1790 = vrot.slane %v1789, 4
        %v1791 = vadd.f32 %v1789, %v1790
        %v1792 = vrot.slane %v1791, 2
        %v1793 = vadd.f32 %v1791, %v1792
        %v1794 = vrot.slane %v1793, 1
        %v1795 = vadd.f32 %v1793, %v1794
        %v1796 = vadd.f32 %v1782, %v1795
        %v1797 = vmul.f32 %v1796, %v1764
        %v1798 = vadd.f32 %v1752, %v1797
        %v1799 = vld [vmem:[%s20] sm:$0xff]
        %v1800 = vld [vmem:[%s20 + $0x8] sm:$0xff]
        %v1801 = vld [vmem:[%s20 + $0x10] sm:$0xff]
        %v1802 = vld [vmem:[%s20 + $0x18] sm:$0xff]
        %v1803 = vld [vmem:[%s20 + $0x20] sm:$0xff]
        %v1804 = vld [vmem:[%s20 + $0x28] sm:$0xff]
        %v1805 = vld [vmem:[%s20 + $0x30] sm:$0xff]
        %v1806 = vld [vmem:[%s20 + $0x38] sm:$0xff]
        %v1807 = vld [vmem:[%s21] sm:$0x1]
        %v1809 = vsel %vm1775, %v1798, 0
        %1811 = vmatprep.subr.mxu0 0.0
        %1812 = vmatpush1.msra.mxu0 0.0
        %1813 = vmatprep.subr.mxu0 0.0
        %1814 = vmatpush1.msra.mxu0 0.0
        %1815 = vmatprep.subr.mxu0 0.0
        %1816 = vmatpush1.msra.mxu0 0.0
        %1817 = vmatprep.subr.mxu0 0.0
        %1818 = vmatpush1.msra.mxu0 0.0
        %1819 = vmatprep.subr.mxu0 0.0
        %1820 = vmatpush1.msra.mxu0 0.0
        %1821 = vmatprep.subr.mxu0 0.0
        %1822 = vmatpush1.msra.mxu0 0.0
        %1823 = vmatprep.subr.mxu0 0.0
        %1824 = vmatpush1.msra.mxu0 0.0
        %1825 = vmatprep.subr.mxu0 0.0
        %1826 = vmatpush1.msra.mxu0 0.0
        %1827 = vmatprep.subr.mxu0 0.0
        %1828 = vmatpush1.msra.mxu0 %v1806
        %1829 = vmatprep.subr.mxu0 0.0
        %1830 = vmatpush1.msra.mxu0 %v1805
        %1831 = vmatprep.subr.mxu0 0.0
        %1832 = vmatpush1.msra.mxu0 %v1804
        %1833 = vmatprep.subr.mxu0 0.0
        %1834 = vmatpush1.msra.mxu0 %v1803
        %1835 = vmatprep.subr.mxu0 0.0
        %1836 = vmatpush1.msra.mxu0 %v1802
        %1837 = vmatprep.subr.mxu0 0.0
        %1838 = vmatpush1.msra.mxu0 %v1801
        %1839 = vmatprep.subr.mxu0 0.0
        %1840 = vmatpush1.msra.mxu0 %v1800
        %1841 = vmatprep.subr.mxu0 0.0
        %1842 = vmatpush1.msra.mxu0 %v1799
        %1843 = vmatprep.subr.mxu0 0.0
        %1844 = vmatpush2.msra.mxu0 0.0
        %1845 = vmatprep.subr.mxu0 0.0
        %1846 = vmatpush2.msra.mxu0 0.0
        %1847 = vmatprep.subr.mxu0 0.0
        %1848 = vmatpush2.msra.mxu0 0.0
        %1849 = vmatprep.subr.mxu0 0.0
        %1850 = vmatpush2.msra.mxu0 0.0
        %1851 = vmatprep.subr.mxu0 0.0
        %1852 = vmatpush2.msra.mxu0 0.0
        %1853 = vmatprep.subr.mxu0 0.0
        %1854 = vmatpush2.msra.mxu0 0.0
        %1855 = vmatprep.subr.mxu0 0.0
        %1856 = vmatpush2.msra.mxu0 0.0
        %1857 = vmatprep.subr.mxu0 0.0
        %1858 = vmatpush2.msra.mxu0 0.0
        %1859 = vmatprep.subr.mxu0 0.0
        %1860 = vmatpush2.msra.mxu0 0.0
        %1861 = vmatprep.subr.mxu0 0.0
        %1862 = vmatpush2.msra.mxu0 0.0
        %1863 = vmatprep.subr.mxu0 0.0
        %1864 = vmatpush2.msra.mxu0 0.0
        %1865 = vmatprep.subr.mxu0 0.0
        %1866 = vmatpush2.msra.mxu0 0.0
        %1867 = vmatprep.subr.mxu0 0.0
        %1868 = vmatpush2.msra.mxu0 0.0
        %1869 = vmatprep.subr.mxu0 0.0
        %1870 = vmatpush2.msra.mxu0 0.0
        %1871 = vmatprep.subr.mxu0 0.0
        %1872 = vmatpush2.msra.mxu0 0.0
        %1873 = vmatprep.subr.mxu0 0.0
        %1874 = vmatpush2.msra.mxu0 0.0
        %1875 = vmatprep.mubr.f32.mxu0 0.0
        %1876 = vmatmul.mubr.f32.gmra.mxu0 %v1809
        %v1877 = vpop.f32.mrf.mxu0
        %v1878 = vadd.f32 %v1807, %v1877
        %v1879 = vpop.f32.mrf.mxu0
        %1880 = vdwg.mxu0
        %1881 = vrot.lane.b32.xlu0 %v1351, 32
        %v1882 = vpop.permute.xlu0 %1881
        %1884 = vrot.lane.b32.xlu0 %v1798, 96
        %v1885 = vpop.permute.xlu0 %1884
        %v1887 = vsel %vm927, %v1878, %v1402
        %v1888 = vsel %vm1775, %v1887, %v1882
        %vm1889 = vcmask 785408
        %v1890 = vsel %vm1889, %v1888, %v1885
        %v1892 = vcombine.low %v1890, %v1885
        %v1894 = vunpack.c.l.s4 1966171168
        %v1895 = vunpack.c.0.s8 %v1894
        %v1896 = vlaneseq
        %v1897 = vshrl.u32 %v1896, 7
        %v1898 = vsub.s32 %v1895, %v1897
        %v1899 = vrot.slane %v1892, %v1898
        %v1901 = vunpack.c.l.s4 1966171168
        %v1902 = vunpack.c.0.s8 %v1901
        %v1903 = vlaneseq
        %v1904 = vshrl.u32 %v1903, 7
        %v1905 = vsub.s32 %v1902, %v1904
        %v1906 = vrot.slane %v1899, %v1905
        %v1908 = vlaneseq
        %vm1909 = vcmp.ge.s32.totalorder %v1908, 0
        %vm1910 = vcmp.lt.s32.totalorder %v1908, 160
        %vm1911 = vmand %vm1909, %vm1910
        %1912 = vst.msk [vmem:[%s910] sm:$0x3] %vm1911, %v1906
        %s1913 = sand.u32 %s548, 1
        %s1914 = scalar_lea.sflag [#allocation4], %s1913
        %s1915 = sand.u32 %s548, 1
        %s1916 = smul.addr %s1915, 2
        %s1917 = scalar_lea.vmem [#allocation19], %s1916
        // Predicated region
        $region149: #{tpu_custom_call.1} parent=107 // pred_check
          %p1918 = pneg %p558
        $region150: #{tpu_custom_call.1} parent=107 // pred_check_branch
          %1920 = sbr.rel (%p1918) target = $region152
        $region151: #{tpu_custom_call.1} parent=107 // pred_region
          %s1922 = ssub.s32 32, 32
          %1923 = vsyncadd %s1914, %s1922
          %s1924 = smul.addr %s48, 2
          %s1925 = smul.addr %s1924, 16
          %s1926 = scalar_lea.hbm %s22, %s1925
          %s1928 = sshll.u32 %s1917, 4
          %s1929 = int_to_ptr.vmem [resolvable:$true] %s1928
          %1931 = dma.vmem_to_hbm [thread:$0]  %s1929, 32, %s1926, %s1914
        $region152: #{tpu_custom_call.1} parent=107 // pred_fallthru
          _
      $region108: #{tpu_custom_call.1} parent=5 // pred_fallthru
        _
      %p1932 = scmp.le.s32.totalorder 2, %s43
      // Predicated region
      $region153: #{tpu_custom_call.1} parent=5 // pred_check
        %p1933 = pneg %p1932
      $region154: #{tpu_custom_call.1} parent=5 // pred_check_branch
        %1935 = sbr.rel (%p1933) target = $region156
      $region155: #{tpu_custom_call.1} parent=5 // pred_region
        %s1936 = ssub.s32 %s43, 2
        // Predicated region
        $region157: #{tpu_custom_call.1} parent=155 // pred_check
          %p1937 = pneg %p564
        $region158: #{tpu_custom_call.1} parent=155 // pred_check_branch
          %1939 = sbr.rel (%p1937) target = $region160
        $region159: #{tpu_custom_call.1} parent=155 // pred_region
          %s1940 = sand.u32 %s549, 1
          %s1941 = scalar_lea.sflag [#allocation4], %s1940
          %s1942 = sand.u32 %s549, 1
          %s1943 = smul.addr %s1942, 2
          %s1944 = scalar_lea.vmem [#allocation19], %s1943
          %1945 = dma.done %s1941, 32
        $region160: #{tpu_custom_call.1} parent=155 // pred_fallthru
          _
      $region156: #{tpu_custom_call.1} parent=5 // pred_fallthru
        _
    $region6: #{tpu_custom_call.1} parent=1 // loop_footer
      %s47 = sadd.s32 1, %s43
    $region7: #{tpu_custom_call.1} parent=1 // loop_footer_branch
      %42 = sbr.rel target = $region3
    $region8: #{tpu_custom_call.1} parent=1 // loop_exit
      _
    %1946 = vsyncpa [#allocation3], 1
    %s1947 = scalar_lea.sflag [#allocation3], 1
    %1948 = vsyncpa %s1947, 1
    %1949 = vsyncpa [#allocation6], 1
    %s1950 = scalar_lea.sflag [#allocation6], 1
    %1951 = vsyncpa %s1950, 1
    %1952 = vsyncpa [#allocation9], 1
    %s1953 = scalar_lea.sflag [#allocation9], 1
    %1954 = vsyncpa %s1953, 1
    %1955 = vsyncpa [#allocation12], 1
    %1956 = vsyncpa [#allocation15], 1
    %1957 = vsyncpa [#allocation18], 1
    %1958 = vsyncpa [#allocation4], 1
    %s1959 = scalar_lea.sflag [#allocation4], 1
    %1960 = vsyncpa %s1959, 1

</llo_original>
